<compile_context>
chip_gen: v7x
topology: tpu7x:2x2x1
jax: 0.10.0
libtpu: 0.0.40
codegen_flags: <defaults>
</compile_context>

<pallas_src>
import functools
import math

import jax
import jax.numpy as jnp
from jax.experimental import pallas as pl
from jax.experimental.pallas import tpu as pltpu

NEG_SLOPE = 0.2
TM_PREF = 1024          # largest M tile; multiple of 16 (bf16 sublane packing)


def _round_up(x, m):
    return ((x + m - 1) // m) * m


def _detect_vmem_budget():
    # Generation-aware VMEM budget: v5e/v6e have 128 MiB per core, v7x 64 MiB.
    try:
        cap = int(pltpu.get_tpu_info().vmem_capacity_bytes)
    except Exception:
        cap = 64 * 1024 * 1024      # assume the smallest (v7x) if unknown
    return int(min((cap * 3) // 4, 100 * 1024 * 1024))


_VMEM_BUDGET = _detect_vmem_budget()


def _vmem_limit(est_bytes):
    return int(min(_VMEM_BUDGET, max(32 * 1024 * 1024, 2 * est_bytes)))


def _choose_tm(M):
    """M tile: big tiles for big M; split small M in two so a v7x chip's two
    TensorCores both get a grid point (block must be 16-aligned or full-dim)."""
    if M > TM_PREF:
        return TM_PREF
    if M >= 64 and M % 32 == 0:
        return M // 2
    return M


# ----------------------------------------------------------------------------
# Pallas kernels: single-shot GEMM (K, N fully resident) + bias + LeakyReLU,
# optionally with the 1x1 OutConv fused into the epilogue.
# ----------------------------------------------------------------------------
def _conv_gemm_kernel(x_ref, w_ref, b_ref, o_ref, *, apply_act):
    acc = jnp.dot(x_ref[...], w_ref[...], preferred_element_type=jnp.float32)
    acc = acc + b_ref[...]
    if apply_act:
        acc = jnp.maximum(acc, NEG_SLOPE * acc)      # LeakyReLU(0.2)
    o_ref[...] = acc.astype(o_ref.dtype)


def _conv_gemm_fused_out_kernel(x_ref, w_ref, b_ref, wo_ref, bo_ref,
                                o_ref, p_ref):
    acc = jnp.dot(x_ref[...], w_ref[...], preferred_element_type=jnp.float32)
    acc = acc + b_ref[...]
    act = jnp.maximum(acc, NEG_SLOPE * acc)          # LeakyReLU(0.2)
    o_ref[...] = act.astype(o_ref.dtype)
    # Fused 1x1 OutConv (cout=1, no activation): per-row channel reduction.
    p_ref[...] = (jnp.sum(act * wo_ref[...], axis=1, keepdims=True)
                  + bo_ref[...]).astype(p_ref.dtype)


def _conv_gemm(cols, layer, apply_act, out_dtype, fused_out=None):
    """cols: (M, K) bf16. layer['w']: (K, Cout) bf16, layer['b']: (1, Cout) f32.

    Weight/bias are VMEM-resident (constant index_map -> DMA'd once); the grid
    only tiles M. Returns (M, Cout) activation (+ (M, 1) fused OutConv result).
    """
    M, K = cols.shape
    w, b = layer["w"], layer["b"]
    cout = w.shape[1]

    tm = _choose_tm(M)
    Mp = _round_up(M, tm)
    if Mp != M:
        # TODO(synk): only reached when M > TM_PREF; a masked last-tile store
        # inside the kernel would avoid this extra pad/slice HBM pass.
        cols = jnp.pad(cols, ((0, Mp - M), (0, 0)))
    grid = (Mp // tm,)

    x_spec = pl.BlockSpec((tm, K), lambda i: (i, 0))
    w_spec = pl.BlockSpec((K, cout), lambda i: (0, 0))   # resident, fetched once
    b_spec = pl.BlockSpec((1, cout), lambda i: (0, 0))
    o_spec = pl.BlockSpec((tm, cout), lambda i: (i, 0))

    out_isz = jnp.dtype(out_dtype).itemsize
    est_vmem = (2 * tm * K * 2            # double-buffered x tiles (bf16)
                + K * cout * 2            # resident weight (bf16)
                + cout * 4                # bias
                + 2 * tm * cout * out_isz)  # double-buffered output tiles
    flops = 2 * Mp * K * cout
    bytes_accessed = (Mp * K * 2 + K * cout * 2 + cout * 4
                      + Mp * cout * out_isz)

    if fused_out is None:
        out = pl.pallas_call(
            functools.partial(_conv_gemm_kernel, apply_act=apply_act),
            out_shape=jax.ShapeDtypeStruct((Mp, cout), out_dtype),
            grid=grid,
            in_specs=[x_spec, w_spec, b_spec],
            out_specs=o_spec,
            compiler_params=pltpu.CompilerParams(
                dimension_semantics=("parallel",),
                vmem_limit_bytes=_vmem_limit(est_vmem)),
            cost_estimate=pl.CostEstimate(
                flops=flops, transcendentals=0, bytes_accessed=bytes_accessed),
        )(cols, w, b)
        return out[:M] if Mp != M else out

    wo, bo = fused_out["w"], fused_out["b"]        # (1, Cout) f32, (1, 1) f32
    est_vmem += wo.size * 4 + 4 + 2 * tm * 4
    flops += 2 * Mp * cout
    bytes_accessed += wo.size * 4 + 4 + Mp * 4
    o, p = pl.pallas_call(
        _conv_gemm_fused_out_kernel,
        out_shape=(jax.ShapeDtypeStruct((Mp, cout), out_dtype),
                   jax.ShapeDtypeStruct((Mp, 1), jnp.float32)),
        grid=grid,
        in_specs=[x_spec, w_spec, b_spec,
                  pl.BlockSpec((1, cout), lambda i: (0, 0)),
                  pl.BlockSpec((1, 1), lambda i: (0, 0))],
        out_specs=[o_spec, pl.BlockSpec((tm, 1), lambda i: (i, 0))],
        compiler_params=pltpu.CompilerParams(
            dimension_semantics=("parallel",),
            vmem_limit_bytes=_vmem_limit(est_vmem)),
        cost_estimate=pl.CostEstimate(
            flops=flops, transcendentals=0, bytes_accessed=bytes_accessed),
    )(cols, w, b, wo, bo)
    if Mp != M:
        o, p = o[:M], p[:M]
    return o, p


# ----------------------------------------------------------------------------
# Conv2d = NHWC im2col (plain-JAX glue, fused by XLA under jit) + Pallas GEMM
# ----------------------------------------------------------------------------
def _im2col_nhwc(x, kh, kw, stride, pad):
    N, H, W, C = x.shape
    if pad:
        x = jnp.pad(x, ((0, 0), (pad, pad), (pad, pad), (0, 0)))
    Ho = (H + 2 * pad - kh) // stride + 1
    Wo = (W + 2 * pad - kw) // stride + 1
    if kh == 1 and kw == 1 and stride == 1:
        return x.reshape(N * Ho * Wo, C), Ho, Wo
    taps = []
    for i in range(kh):
        for j in range(kw):
            taps.append(x[:, i:i + stride * Ho:stride,
                          j:j + stride * Wo:stride, :])
    # Feature order (i, j, c) matches the (kh, kw, Cin, Cout) weight flatten
    # done once at parameter-setup time.
    cols = jnp.concatenate(taps, axis=-1).reshape(N * Ho * Wo, kh * kw * C)
    return cols, Ho, Wo


def conv_block(x_nhwc, p, apply_act=True, out_dtype=jnp.bfloat16):
    N = x_nhwc.shape[0]
    cols, Ho, Wo = _im2col_nhwc(x_nhwc, p["kh"], p["kw"], p["stride"], p["pad"])
    out = _conv_gemm(cols, p, apply_act, out_dtype)
    return out.reshape(N, Ho, Wo, p["cout"])


def conv_block_fused_out(x_nhwc, p, out_p):
    """c2 conv + LeakyReLU, with the level's 1x1 OutConv fused in the kernel."""
    N = x_nhwc.shape[0]
    cols, Ho, Wo = _im2col_nhwc(x_nhwc, p["kh"], p["kw"], p["stride"], p["pad"])
    o, pr = _conv_gemm(cols, p, True, jnp.bfloat16, fused_out=out_p)
    return o.reshape(N, Ho, Wo, p["cout"]), pr.reshape(N, Ho, Wo, 1)


# ----------------------------------------------------------------------------
# Parameter setup: init + spectral-norm fold + pre-transpose (done once)
# ----------------------------------------------------------------------------
def _spectral_normalize(w, n_iter=30, eps=1e-12):
    cout = w.shape[0]
    wm = w.reshape(cout, -1)
    u = jnp.ones((cout,), jnp.float32) / jnp.sqrt(jnp.float32(cout))
    v = wm.T @ u
    for _ in range(n_iter):
        v = wm.T @ u
        v = v / (jnp.linalg.norm(v) + eps)
        u = wm @ v
        u = u / (jnp.linalg.norm(u) + eps)
    sigma = u @ (wm @ v)
    return w / sigma


def _conv_init(key, cout, cin, kh, kw):
    kw_, kb_ = jax.random.split(key)
    fan_in = cin * kh * kw
    bound = 1.0 / math.sqrt(fan_in)
    w = jax.random.uniform(kw_, (cout, cin, kh, kw), jnp.float32, -bound, bound)
    b = jax.random.uniform(kb_, (cout,), jnp.float32, -bound, bound)
    return w, b


def _prep_conv(key, cin, cout, kh, kw, stride, pad):
    w, b = _conv_init(key, cout, cin, kh, kw)
    w = _spectral_normalize(w)
    # (Cout, Cin, kh, kw) -> (kh, kw, Cin, Cout) -> (kh*kw*Cin, Cout), matching
    # the (i, j, c) feature order produced by _im2col_nhwc.  No K/N padding.
    w_t = jnp.transpose(w, (2, 3, 1, 0)).reshape(kh * kw * cin, cout)
    return {"w": w_t.astype(jnp.bfloat16),
            "b": b.reshape(1, cout).astype(jnp.float32),
            "cout": cout, "kh": kh, "kw": kw, "stride": stride, "pad": pad}


def _prep_out_conv(key, cin):
    w, b = _conv_init(key, 1, cin, 1, 1)          # (1, cin, 1, 1)
    w = _spectral_normalize(w)
    return {"w": w.reshape(1, cin).astype(jnp.float32),
            "b": b.reshape(1, 1).astype(jnp.float32)}


def init_params(key, nc, ndf, n_layers):
    keys = jax.random.split(key, 1 + 3 * (n_layers - 1))
    params = {
        "l1": _prep_conv(keys[0], nc, ndf, 4, 4, stride=2, pad=1),
        "layers": [],
    }
    c_in = ndf
    ki = 1
    for _ in range(n_layers - 1):
        c_out = min(c_in * 2, 512)
        params["layers"].append({
            "c1": _prep_conv(keys[ki], c_in, c_out, 3, 3, stride=1, pad=1),
            "c2": _prep_conv(keys[ki + 1], c_out, c_out, 3, 3, stride=2, pad=1),
            "out": _prep_out_conv(keys[ki + 2], c_out),
        })
        c_in = c_out
        ki += 3
    return params


# ----------------------------------------------------------------------------
# PyramidGAN_large forward
# ----------------------------------------------------------------------------
def pyramid_gan_large_forward(x_nchw, params):
    x = jnp.transpose(x_nchw, (0, 2, 3, 1)).astype(jnp.bfloat16)  # NCHW -> NHWC
    # l1: SpectralConvUnit(nc, ndf, k=4, s=2, p=1) -> LeakyReLU(conv(x))
    temp = conv_block(x, params["l1"], apply_act=True)
    outputs = []
    for lp in params["layers"]:
        # SpectralConvUnit(c_in, c_out, k=3, s=1, p=1)
        temp = conv_block(temp, lp["c1"], apply_act=True)
        # SpectralConvUnit(c_out, c_out, k=3, s=2, p=1) with the level's 1x1
        # OutConv fused into the same kernel's epilogue.
        temp, out = conv_block_fused_out(temp, lp["c2"], lp["out"])
        outputs.append(jnp.transpose(out, (0, 3, 1, 2)))  # NCHW at API boundary
    return outputs


if __name__ == "__main__":
    # Config consistent with the module: args.nchannels=4, args.ndf=8,
    # args.n_disc_layers=3, args.n_groupnorm=4 (GroupNorm unused in forward).
    nc, ndf, n_layers = 4, 8, 3
    key = jax.random.PRNGKey(0)
    k_param, k_x = jax.random.split(key)

    params = init_params(k_param, nc=nc, ndf=ndf, n_layers=n_layers)
    x = jax.random.normal(k_x, (2, nc, 16, 16), jnp.float32)  # NCHW

    fwd = jax.jit(lambda xx: pyramid_gan_large_forward(xx, params))
    outs = fwd(x)
    outs = [jax.block_until_ready(o) for o in outs]

    # Expected pyramid output shapes: [(2,1,4,4), (2,1,2,2)]
    expected = [(2, 1, 4, 4), (2, 1, 2, 2)]
    assert [tuple(o.shape) for o in outs] == expected, [o.shape for o in outs]
    assert all(bool(jnp.all(jnp.isfinite(o))) for o in outs)
    print("KERNEL_OK")
</pallas_src>

<mosaic_0001>
module attributes {stable_mosaic.version = 11 : i64} {
  func.func @_conv_gemm_kernel(%arg0: i32, %arg1: memref<64x64xbf16, #tpu.memory_space<vmem>>, %arg2: memref<64x8xbf16, #tpu.memory_space<vmem>>, %arg3: memref<1x8xf32, #tpu.memory_space<vmem>>, %arg4: memref<64x8xbf16, #tpu.memory_space<vmem>>) attributes {dimension_semantics = [#tpu.dimension_semantics<parallel>], iteration_bounds = array<i64: 2>, scalar_prefetch = 0 : i64, scratch_operands = 0 : i64, tpu.core_type = #tpu.core_type<tc>, window_params = [{transform_indices = @transform_0, window_bounds = array<i64: 64, 64>}, {pipeline_mode = #tpu.pipeline_mode<synchronous>, transform_indices = @transform_1, window_bounds = array<i64: 64, 8>}, {pipeline_mode = #tpu.pipeline_mode<synchronous>, transform_indices = @transform_2, window_bounds = array<i64: 1, 8>}, {transform_indices = @transform_3, window_bounds = array<i64: 64, 8>}]} {
    %c0 = arith.constant 0 : index
    %c0_0 = arith.constant 0 : index
    %0 = vector.load %arg1[%c0, %c0_0] : memref<64x64xbf16, #tpu.memory_space<vmem>>, vector<64x64xbf16>
    %c0_1 = arith.constant 0 : index
    %c0_2 = arith.constant 0 : index
    %1 = vector.load %arg2[%c0_1, %c0_2] : memref<64x8xbf16, #tpu.memory_space<vmem>>, vector<64x8xbf16>
    %cst = arith.constant dense<0.000000e+00> : vector<64x8xf32>
    %2 = tpu.matmul %0, %1, %cst {dimension_numbers = #tpu.dot_dimension_numbers<[1], [0], [0], [1], [0, 0, 1, 1], [], []>} : vector<64x64xbf16>, vector<64x8xbf16>, vector<64x8xf32> -> vector<64x8xf32>
    %c0_3 = arith.constant 0 : index
    %c0_4 = arith.constant 0 : index
    %3 = vector.load %arg3[%c0_3, %c0_4] : memref<1x8xf32, #tpu.memory_space<vmem>>, vector<1x8xf32>
    %4 = vector.broadcast %3 : vector<1x8xf32> to vector<64x8xf32>
    %5 = arith.addf %2, %4 : vector<64x8xf32>
    %cst_5 = arith.constant 2.000000e-01 : f32
    %6 = vector.broadcast %cst_5 : f32 to vector<64x8xf32>
    %7 = arith.mulf %6, %5 : vector<64x8xf32>
    %8 = arith.maximumf %5, %7 : vector<64x8xf32>
    %9 = arith.truncf %8 : vector<64x8xf32> to vector<64x8xbf16>
    %c0_6 = arith.constant 0 : index
    %c0_7 = arith.constant 0 : index
    %10 = vector.load %arg4[%c0_6, %c0_7] : memref<64x8xbf16, #tpu.memory_space<vmem>>, vector<64x8xbf16>
    tpu.vector_store %arg4[%c0_6, %c0_7], %9 {strides = array<i32>} : memref<64x8xbf16, #tpu.memory_space<vmem>>, vector<64x8xbf16>,
    return
  }
  func.func @transform_0(%arg0: i32) -> (i32, i32) {
    %c0_i32 = arith.constant 0 : i32
    %c0_i32_0 = arith.constant 0 : i32
    return %arg0, %c0_i32 : i32, i32
  }
  func.func @transform_1(%arg0: i32) -> (i32, i32) {
    %c0_i32 = arith.constant 0 : i32
    %c0_i32_0 = arith.constant 0 : i32
    %c0_i32_1 = arith.constant 0 : i32
    return %c0_i32, %c0_i32_0 : i32, i32
  }
  func.func @transform_2(%arg0: i32) -> (i32, i32) {
    %c0_i32 = arith.constant 0 : i32
    %c0_i32_0 = arith.constant 0 : i32
    %c0_i32_1 = arith.constant 0 : i32
    return %c0_i32, %c0_i32_0 : i32, i32
  }
  func.func @transform_3(%arg0: i32) -> (i32, i32) {
    %c0_i32 = arith.constant 0 : i32
    %c0_i32_0 = arith.constant 0 : i32
    return %arg0, %c0_i32 : i32, i32
  }
}

module attributes {stable_mosaic.version = 11 : i64} {
  func.func @_conv_gemm_kernel(%arg0: i32, %arg1: memref<64x72xbf16, #tpu.memory_space<vmem>>, %arg2: memref<72x16xbf16, #tpu.memory_space<vmem>>, %arg3: memref<1x16xf32, #tpu.memory_space<vmem>>, %arg4: memref<64x16xbf16, #tpu.memory_space<vmem>>) attributes {dimension_semantics = [#tpu.dimension_semantics<parallel>], iteration_bounds = array<i64: 2>, scalar_prefetch = 0 : i64, scratch_operands = 0 : i64, tpu.core_type = #tpu.core_type<tc>, window_params = [{transform_indices = @transform_0, window_bounds = array<i64: 64, 72>}, {pipeline_mode = #tpu.pipeline_mode<synchronous>, transform_indices = @transform_1, window_bounds = array<i64: 72, 16>}, {pipeline_mode = #tpu.pipeline_mode<synchronous>, transform_indices = @transform_2, window_bounds = array<i64: 1, 16>}, {transform_indices = @transform_3, window_bounds = array<i64: 64, 16>}]} {
    %c0 = arith.constant 0 : index
    %c0_0 = arith.constant 0 : index
    %0 = vector.load %arg1[%c0, %c0_0] : memref<64x72xbf16, #tpu.memory_space<vmem>>, vector<64x72xbf16>
    %c0_1 = arith.constant 0 : index
    %c0_2 = arith.constant 0 : index
    %1 = vector.load %arg2[%c0_1, %c0_2] : memref<72x16xbf16, #tpu.memory_space<vmem>>, vector<72x16xbf16>
    %cst = arith.constant dense<0.000000e+00> : vector<64x16xf32>
    %2 = tpu.matmul %0, %1, %cst {dimension_numbers = #tpu.dot_dimension_numbers<[1], [0], [0], [1], [0, 0, 1, 1], [], []>} : vector<64x72xbf16>, vector<72x16xbf16>, vector<64x16xf32> -> vector<64x16xf32>
    %c0_3 = arith.constant 0 : index
    %c0_4 = arith.constant 0 : index
    %3 = vector.load %arg3[%c0_3, %c0_4] : memref<1x16xf32, #tpu.memory_space<vmem>>, vector<1x16xf32>
    %4 = vector.broadcast %3 : vector<1x16xf32> to vector<64x16xf32>
    %5 = arith.addf %2, %4 : vector<64x16xf32>
    %cst_5 = arith.constant 2.000000e-01 : f32
    %6 = vector.broadcast %cst_5 : f32 to vector<64x16xf32>
    %7 = arith.mulf %6, %5 : vector<64x16xf32>
    %8 = arith.maximumf %5, %7 : vector<64x16xf32>
    %9 = arith.truncf %8 : vector<64x16xf32> to vector<64x16xbf16>
    %c0_6 = arith.constant 0 : index
    %c0_7 = arith.constant 0 : index
    %10 = vector.load %arg4[%c0_6, %c0_7] : memref<64x16xbf16, #tpu.memory_space<vmem>>, vector<64x16xbf16>
    tpu.vector_store %arg4[%c0_6, %c0_7], %9 {strides = array<i32>} : memref<64x16xbf16, #tpu.memory_space<vmem>>, vector<64x16xbf16>,
    return
  }
  func.func @transform_0(%arg0: i32) -> (i32, i32) {
    %c0_i32 = arith.constant 0 : i32
    %c0_i32_0 = arith.constant 0 : i32
    return %arg0, %c0_i32 : i32, i32
  }
  func.func @transform_1(%arg0: i32) -> (i32, i32) {
    %c0_i32 = arith.constant 0 : i32
    %c0_i32_0 = arith.constant 0 : i32
    %c0_i32_1 = arith.constant 0 : i32
    return %c0_i32, %c0_i32_0 : i32, i32
  }
  func.func @transform_2(%arg0: i32) -> (i32, i32) {
    %c0_i32 = arith.constant 0 : i32
    %c0_i32_0 = arith.constant 0 : i32
    %c0_i32_1 = arith.constant 0 : i32
    return %c0_i32, %c0_i32_0 : i32, i32
  }
  func.func @transform_3(%arg0: i32) -> (i32, i32) {
    %c0_i32 = arith.constant 0 : i32
    %c0_i32_0 = arith.constant 0 : i32
    return %arg0, %c0_i32 : i32, i32
  }
}

module attributes {stable_mosaic.version = 11 : i64} {
  func.func @_conv_gemm_fused_out_kernel(%arg0: i32, %arg1: memref<32x144xbf16, #tpu.memory_space<vmem>>, %arg2: memref<144x16xbf16, #tpu.memory_space<vmem>>, %arg3: memref<1x16xf32, #tpu.memory_space<vmem>>, %arg4: memref<1x16xf32, #tpu.memory_space<vmem>>, %arg5: memref<1x1xf32, #tpu.memory_space<vmem>>, %arg6: memref<32x16xbf16, #tpu.memory_space<vmem>>, %arg7: memref<32x1xf32, #tpu.memory_space<vmem>>) attributes {dimension_semantics = [#tpu.dimension_semantics<parallel>], iteration_bounds = array<i64: 1>, scalar_prefetch = 0 : i64, scratch_operands = 0 : i64, tpu.core_type = #tpu.core_type<tc>, window_params = [{transform_indices = @transform_0, window_bounds = array<i64: 32, 144>}, {pipeline_mode = #tpu.pipeline_mode<synchronous>, transform_indices = @transform_1, window_bounds = array<i64: 144, 16>}, {pipeline_mode = #tpu.pipeline_mode<synchronous>, transform_indices = @transform_2, window_bounds = array<i64: 1, 16>}, {pipeline_mode = #tpu.pipeline_mode<synchronous>, transform_indices = @transform_3, window_bounds = array<i64: 1, 16>}, {pipeline_mode = #tpu.pipeline_mode<synchronous>, transform_indices = @transform_4, window_bounds = array<i64: 1, 1>}, {transform_indices = @transform_5, window_bounds = array<i64: 32, 16>}, {transform_indices = @transform_6, window_bounds = array<i64: 32, 1>}]} {
    %c0 = arith.constant 0 : index
    %c0_0 = arith.constant 0 : index
    %0 = vector.load %arg1[%c0, %c0_0] : memref<32x144xbf16, #tpu.memory_space<vmem>>, vector<32x144xbf16>
    %c0_1 = arith.constant 0 : index
    %c0_2 = arith.constant 0 : index
    %1 = vector.load %arg2[%c0_1, %c0_2] : memref<144x16xbf16, #tpu.memory_space<vmem>>, vector<144x16xbf16>
    %cst = arith.constant dense<0.000000e+00> : vector<32x16xf32>
    %2 = tpu.matmul %0, %1, %cst {dimension_numbers = #tpu.dot_dimension_numbers<[1], [0], [0], [1], [0, 0, 1, 1], [], []>} : vector<32x144xbf16>, vector<144x16xbf16>, vector<32x16xf32> -> vector<32x16xf32>
    %c0_3 = arith.constant 0 : index
    %c0_4 = arith.constant 0 : index
    %3 = vector.load %arg3[%c0_3, %c0_4] : memref<1x16xf32, #tpu.memory_space<vmem>>, vector<1x16xf32>
    %4 = vector.broadcast %3 : vector<1x16xf32> to vector<32x16xf32>
    %5 = arith.addf %2, %4 : vector<32x16xf32>
    %cst_5 = arith.constant 2.000000e-01 : f32
    %6 = vector.broadcast %cst_5 : f32 to vector<32x16xf32>
    %7 = arith.mulf %6, %5 : vector<32x16xf32>
    %8 = arith.maximumf %5, %7 : vector<32x16xf32>
    %9 = arith.truncf %8 : vector<32x16xf32> to vector<32x16xbf16>
    %c0_6 = arith.constant 0 : index
    %c0_7 = arith.constant 0 : index
    %10 = vector.load %arg6[%c0_6, %c0_7] : memref<32x16xbf16, #tpu.memory_space<vmem>>, vector<32x16xbf16>
    tpu.vector_store %arg6[%c0_6, %c0_7], %9 {strides = array<i32>} : memref<32x16xbf16, #tpu.memory_space<vmem>>, vector<32x16xbf16>,
    %c0_8 = arith.constant 0 : index
    %c0_9 = arith.constant 0 : index
    %11 = vector.load %arg4[%c0_8, %c0_9] : memref<1x16xf32, #tpu.memory_space<vmem>>, vector<1x16xf32>
    %12 = vector.broadcast %11 : vector<1x16xf32> to vector<32x16xf32>
    %13 = arith.mulf %8, %12 : vector<32x16xf32>
    %cst_10 = arith.constant dense<0.000000e+00> : vector<32xf32>
    %14 = vector.multi_reduction <add>, %13, %cst_10 [1] : vector<32x16xf32> to vector<32xf32>
    %15 = vector.shape_cast %14 : vector<32xf32> to vector<32x1xf32>
    %c0_11 = arith.constant 0 : index
    %c0_12 = arith.constant 0 : index
    %16 = vector.load %arg5[%c0_11, %c0_12] : memref<1x1xf32, #tpu.memory_space<vmem>>, vector<1x1xf32>
    %17 = vector.broadcast %16 : vector<1x1xf32> to vector<32x1xf32>
    %18 = arith.addf %15, %17 : vector<32x1xf32>
    %c0_13 = arith.constant 0 : index
    %c0_14 = arith.constant 0 : index
    %19 = vector.load %arg7[%c0_13, %c0_14] : memref<32x1xf32, #tpu.memory_space<vmem>>, vector<32x1xf32>
    tpu.vector_store %arg7[%c0_13, %c0_14], %18 {strides = array<i32>} : memref<32x1xf32, #tpu.memory_space<vmem>>, vector<32x1xf32>,
    return
  }
  func.func @transform_0(%arg0: i32) -> (i32, i32) {
    %c0_i32 = arith.constant 0 : i32
    %c0_i32_0 = arith.constant 0 : i32
    return %arg0, %c0_i32 : i32, i32
  }
  func.func @transform_1(%arg0: i32) -> (i32, i32) {
    %c0_i32 = arith.constant 0 : i32
    %c0_i32_0 = arith.constant 0 : i32
    %c0_i32_1 = arith.constant 0 : i32
    return %c0_i32, %c0_i32_0 : i32, i32
  }
  func.func @transform_2(%arg0: i32) -> (i32, i32) {
    %c0_i32 = arith.constant 0 : i32
    %c0_i32_0 = arith.constant 0 : i32
    %c0_i32_1 = arith.constant 0 : i32
    return %c0_i32, %c0_i32_0 : i32, i32
  }
  func.func @transform_3(%arg0: i32) -> (i32, i32) {
    %c0_i32 = arith.constant 0 : i32
    %c0_i32_0 = arith.constant 0 : i32
    %c0_i32_1 = arith.constant 0 : i32
    return %c0_i32, %c0_i32_0 : i32, i32
  }
  func.func @transform_4(%arg0: i32) -> (i32, i32) {
    %c0_i32 = arith.constant 0 : i32
    %c0_i32_0 = arith.constant 0 : i32
    %c0_i32_1 = arith.constant 0 : i32
    return %c0_i32, %c0_i32_0 : i32, i32
  }
  func.func @transform_5(%arg0: i32) -> (i32, i32) {
    %c0_i32 = arith.constant 0 : i32
    %c0_i32_0 = arith.constant 0 : i32
    return %arg0, %c0_i32 : i32, i32
  }
  func.func @transform_6(%arg0: i32) -> (i32, i32) {
    %c0_i32 = arith.constant 0 : i32
    %c0_i32_0 = arith.constant 0 : i32
    return %arg0, %c0_i32 : i32, i32
  }
}

module attributes {stable_mosaic.version = 11 : i64} {
  func.func @_conv_gemm_kernel(%arg0: i32, %arg1: memref<32x144xbf16, #tpu.memory_space<vmem>>, %arg2: memref<144x32xbf16, #tpu.memory_space<vmem>>, %arg3: memref<1x32xf32, #tpu.memory_space<vmem>>, %arg4: memref<32x32xbf16, #tpu.memory_space<vmem>>) attributes {dimension_semantics = [#tpu.dimension_semantics<parallel>], iteration_bounds = array<i64: 1>, scalar_prefetch = 0 : i64, scratch_operands = 0 : i64, tpu.core_type = #tpu.core_type<tc>, window_params = [{transform_indices = @transform_0, window_bounds = array<i64: 32, 144>}, {pipeline_mode = #tpu.pipeline_mode<synchronous>, transform_indices = @transform_1, window_bounds = array<i64: 144, 32>}, {pipeline_mode = #tpu.pipeline_mode<synchronous>, transform_indices = @transform_2, window_bounds = array<i64: 1, 32>}, {transform_indices = @transform_3, window_bounds = array<i64: 32, 32>}]} {
    %c0 = arith.constant 0 : index
    %c0_0 = arith.constant 0 : index
    %0 = vector.load %arg1[%c0, %c0_0] : memref<32x144xbf16, #tpu.memory_space<vmem>>, vector<32x144xbf16>
    %c0_1 = arith.constant 0 : index
    %c0_2 = arith.constant 0 : index
    %1 = vector.load %arg2[%c0_1, %c0_2] : memref<144x32xbf16, #tpu.memory_space<vmem>>, vector<144x32xbf16>
    %cst = arith.constant dense<0.000000e+00> : vector<32x32xf32>
    %2 = tpu.matmul %0, %1, %cst {dimension_numbers = #tpu.dot_dimension_numbers<[1], [0], [0], [1], [0, 0, 1, 1], [], []>} : vector<32x144xbf16>, vector<144x32xbf16>, vector<32x32xf32> -> vector<32x32xf32>
    %c0_3 = arith.constant 0 : index
    %c0_4 = arith.constant 0 : index
    %3 = vector.load %arg3[%c0_3, %c0_4] : memref<1x32xf32, #tpu.memory_space<vmem>>, vector<1x32xf32>
    %4 = vector.broadcast %3 : vector<1x32xf32> to vector<32x32xf32>
    %5 = arith.addf %2, %4 : vector<32x32xf32>
    %cst_5 = arith.constant 2.000000e-01 : f32
    %6 = vector.broadcast %cst_5 : f32 to vector<32x32xf32>
    %7 = arith.mulf %6, %5 : vector<32x32xf32>
    %8 = arith.maximumf %5, %7 : vector<32x32xf32>
    %9 = arith.truncf %8 : vector<32x32xf32> to vector<32x32xbf16>
    %c0_6 = arith.constant 0 : index
    %c0_7 = arith.constant 0 : index
    %10 = vector.load %arg4[%c0_6, %c0_7] : memref<32x32xbf16, #tpu.memory_space<vmem>>, vector<32x32xbf16>
    tpu.vector_store %arg4[%c0_6, %c0_7], %9 {strides = array<i32>} : memref<32x32xbf16, #tpu.memory_space<vmem>>, vector<32x32xbf16>,
    return
  }
  func.func @transform_0(%arg0: i32) -> (i32, i32) {
    %c0_i32 = arith.constant 0 : i32
    %c0_i32_0 = arith.constant 0 : i32
    return %arg0, %c0_i32 : i32, i32
  }
  func.func @transform_1(%arg0: i32) -> (i32, i32) {
    %c0_i32 = arith.constant 0 : i32
    %c0_i32_0 = arith.constant 0 : i32
    %c0_i32_1 = arith.constant 0 : i32
    return %c0_i32, %c0_i32_0 : i32, i32
  }
  func.func @transform_2(%arg0: i32) -> (i32, i32) {
    %c0_i32 = arith.constant 0 : i32
    %c0_i32_0 = arith.constant 0 : i32
    %c0_i32_1 = arith.constant 0 : i32
    return %c0_i32, %c0_i32_0 : i32, i32
  }
  func.func @transform_3(%arg0: i32) -> (i32, i32) {
    %c0_i32 = arith.constant 0 : i32
    %c0_i32_0 = arith.constant 0 : i32
    return %arg0, %c0_i32 : i32, i32
  }
}

module attributes {stable_mosaic.version = 11 : i64} {
  func.func @_conv_gemm_fused_out_kernel(%arg0: i32, %arg1: memref<8x288xbf16, #tpu.memory_space<vmem>>, %arg2: memref<288x32xbf16, #tpu.memory_space<vmem>>, %arg3: memref<1x32xf32, #tpu.memory_space<vmem>>, %arg4: memref<1x32xf32, #tpu.memory_space<vmem>>, %arg5: memref<1x1xf32, #tpu.memory_space<vmem>>, %arg6: memref<8x32xbf16, #tpu.memory_space<vmem>>, %arg7: memref<8x1xf32, #tpu.memory_space<vmem>>) attributes {dimension_semantics = [#tpu.dimension_semantics<parallel>], iteration_bounds = array<i64: 1>, scalar_prefetch = 0 : i64, scratch_operands = 0 : i64, tpu.core_type = #tpu.core_type<tc>, window_params = [{transform_indices = @transform_0, window_bounds = array<i64: 8, 288>}, {pipeline_mode = #tpu.pipeline_mode<synchronous>, transform_indices = @transform_1, window_bounds = array<i64: 288, 32>}, {pipeline_mode = #tpu.pipeline_mode<synchronous>, transform_indices = @transform_2, window_bounds = array<i64: 1, 32>}, {pipeline_mode = #tpu.pipeline_mode<synchronous>, transform_indices = @transform_3, window_bounds = array<i64: 1, 32>}, {pipeline_mode = #tpu.pipeline_mode<synchronous>, transform_indices = @transform_4, window_bounds = array<i64: 1, 1>}, {transform_indices = @transform_5, window_bounds = array<i64: 8, 32>}, {transform_indices = @transform_6, window_bounds = array<i64: 8, 1>}]} {
    %c0 = arith.constant 0 : index
    %c0_0 = arith.constant 0 : index
    %0 = vector.load %arg1[%c0, %c0_0] : memref<8x288xbf16, #tpu.memory_space<vmem>>, vector<8x288xbf16>
    %c0_1 = arith.constant 0 : index
    %c0_2 = arith.constant 0 : index
    %1 = vector.load %arg2[%c0_1, %c0_2] : memref<288x32xbf16, #tpu.memory_space<vmem>>, vector<288x32xbf16>
    %cst = arith.constant dense<0.000000e+00> : vector<8x32xf32>
    %2 = tpu.matmul %0, %1, %cst {dimension_numbers = #tpu.dot_dimension_numbers<[1], [0], [0], [1], [0, 0, 1, 1], [], []>} : vector<8x288xbf16>, vector<288x32xbf16>, vector<8x32xf32> -> vector<8x32xf32>
    %c0_3 = arith.constant 0 : index
    %c0_4 = arith.constant 0 : index
    %3 = vector.load %arg3[%c0_3, %c0_4] : memref<1x32xf32, #tpu.memory_space<vmem>>, vector<1x32xf32>
    %4 = vector.broadcast %3 : vector<1x32xf32> to vector<8x32xf32>
    %5 = arith.addf %2, %4 : vector<8x32xf32>
    %cst_5 = arith.constant 2.000000e-01 : f32
    %6 = vector.broadcast %cst_5 : f32 to vector<8x32xf32>
    %7 = arith.mulf %6, %5 : vector<8x32xf32>
    %8 = arith.maximumf %5, %7 : vector<8x32xf32>
    %9 = arith.truncf %8 : vector<8x32xf32> to vector<8x32xbf16>
    %c0_6 = arith.constant 0 : index
    %c0_7 = arith.constant 0 : index
    %10 = vector.load %arg6[%c0_6, %c0_7] : memref<8x32xbf16, #tpu.memory_space<vmem>>, vector<8x32xbf16>
    tpu.vector_store %arg6[%c0_6, %c0_7], %9 {strides = array<i32>} : memref<8x32xbf16, #tpu.memory_space<vmem>>, vector<8x32xbf16>,
    %c0_8 = arith.constant 0 : index
    %c0_9 = arith.constant 0 : index
    %11 = vector.load %arg4[%c0_8, %c0_9] : memref<1x32xf32, #tpu.memory_space<vmem>>, vector<1x32xf32>
    %12 = vector.broadcast %11 : vector<1x32xf32> to vector<8x32xf32>
    %13 = arith.mulf %8, %12 : vector<8x32xf32>
    %cst_10 = arith.constant dense<0.000000e+00> : vector<8xf32>
    %14 = vector.multi_reduction <add>, %13, %cst_10 [1] : vector<8x32xf32> to vector<8xf32>
    %15 = vector.shape_cast %14 : vector<8xf32> to vector<8x1xf32>
    %c0_11 = arith.constant 0 : index
    %c0_12 = arith.constant 0 : index
    %16 = vector.load %arg5[%c0_11, %c0_12] : memref<1x1xf32, #tpu.memory_space<vmem>>, vector<1x1xf32>
    %17 = vector.broadcast %16 : vector<1x1xf32> to vector<8x1xf32>
    %18 = arith.addf %15, %17 : vector<8x1xf32>
    %c0_13 = arith.constant 0 : index
    %c0_14 = arith.constant 0 : index
    %19 = vector.load %arg7[%c0_13, %c0_14] : memref<8x1xf32, #tpu.memory_space<vmem>>, vector<8x1xf32>
    tpu.vector_store %arg7[%c0_13, %c0_14], %18 {strides = array<i32>} : memref<8x1xf32, #tpu.memory_space<vmem>>, vector<8x1xf32>,
    return
  }
  func.func @transform_0(%arg0: i32) -> (i32, i32) {
    %c0_i32 = arith.constant 0 : i32
    %c0_i32_0 = arith.constant 0 : i32
    return %arg0, %c0_i32 : i32, i32
  }
  func.func @transform_1(%arg0: i32) -> (i32, i32) {
    %c0_i32 = arith.constant 0 : i32
    %c0_i32_0 = arith.constant 0 : i32
    %c0_i32_1 = arith.constant 0 : i32
    return %c0_i32, %c0_i32_0 : i32, i32
  }
  func.func @transform_2(%arg0: i32) -> (i32, i32) {
    %c0_i32 = arith.constant 0 : i32
    %c0_i32_0 = arith.constant 0 : i32
    %c0_i32_1 = arith.constant 0 : i32
    return %c0_i32, %c0_i32_0 : i32, i32
  }
  func.func @transform_3(%arg0: i32) -> (i32, i32) {
    %c0_i32 = arith.constant 0 : i32
    %c0_i32_0 = arith.constant 0 : i32
    %c0_i32_1 = arith.constant 0 : i32
    return %c0_i32, %c0_i32_0 : i32, i32
  }
  func.func @transform_4(%arg0: i32) -> (i32, i32) {
    %c0_i32 = arith.constant 0 : i32
    %c0_i32_0 = arith.constant 0 : i32
    %c0_i32_1 = arith.constant 0 : i32
    return %c0_i32, %c0_i32_0 : i32, i32
  }
  func.func @transform_5(%arg0: i32) -> (i32, i32) {
    %c0_i32 = arith.constant 0 : i32
    %c0_i32_0 = arith.constant 0 : i32
    return %arg0, %c0_i32 : i32, i32
  }
  func.func @transform_6(%arg0: i32) -> (i32, i32) {
    %c0_i32 = arith.constant 0 : i32
    %c0_i32_0 = arith.constant 0 : i32
    return %arg0, %c0_i32 : i32, i32
  }
}

</mosaic_0001>

<llo_original>
// kernel: _lambda_.5
$region0: #{_lambda_.5}
  #allocation0 [shape = 'u32[]', space=smem, size = 0x4, offset = 0x4, fixed_abs, tag = 'smem constant byte address 0x4 - core index']
  #allocation1 [shape = 'u32[144,128]{1,0:T(1,128)}', space=vmem, size = 0x12000, scoped, tag = 'internal scratch']
  %s0 = inlined_call_operand.vmem [shape: bf16[128,64], index: 0, kind: input, shape index: {}]
  %s1 = inlined_call_operand.vmem [shape: bf16[64,8], index: 1, kind: input, shape index: {}]
  %s2 = inlined_call_operand.vmem [shape: f32[1,8], index: 2, kind: input, shape index: {}]
  %s3 = inlined_call_operand.vmem [shape: bf16[128,8], index: 3, kind: output, shape index: {}]
  %s4 = sld [smem:[#allocation0]]
  $region45: #{_lambda_.5} parent=0
    _
  %s6 = ssub.s32 1, %s4
  %s7 = scalar_select 0, %s6, %s4
  loop: start=0, step=1, limit=4
  $region2: #{_lambda_.5} parent=0 // loop_pre_header
    _
  $region3: #{_lambda_.5} parent=0 // loop_header
    %s9 = sphi 0, %s13
    %p10 = scmp.ge.s32.totalorder %s9, 4
    %s19 = sphi 0, %s21
    %s22 = sphi 0, %s19
    %s23 = sphi 0, %s22
    %s39 = sphi 0, %s23
    %s43 = sphi 0, %s43
    %s45 = sphi 0, %s43
    %s46 = sphi 0, %s45
    %s60 = sphi 0, %s46
    %s64 = sphi 0, %s64
    %s66 = sphi 0, %s64
    %s67 = sphi 0, %s66
    %s81 = sphi 0, %s67
    %s87 = sphi 0, %s89
    %s90 = sphi 0, %s87
    %s91 = sphi 0, %s90
    %s107 = sphi 0, %s91
  $region4: #{_lambda_.5} parent=0 // loop_header_branch
    %12 = sbr.rel (%p10) target = $region8
  $region5: #{_lambda_.5} parent=0 // loop_body
    %s14 = ssub.s32 %s9, 1
    %s15 = ssub.s32 %s9, 2
    %s16 = sadd.s32 %s9, 1
    %s17 = ssub.s32 %s9, %s16
    %p18 = scmp.eq.s32.totalorder %s17, 0
    %s20 = sadd.s32 %s19, 1
    %s21 = scalar_select %p18, %s19, %s20
    %p24 = pneg %p18
    %p25 = scmp.eq.s32.totalorder %s9, 1
    %p26 = por %p24, %p25
    %p27 = scmp.ne.s32.totalorder %s19, %s22
    %p28 = scmp.eq.s32.totalorder %s9, 0
    %p29 = por %p27, %p28
    %p30 = scmp.ne.s32.totalorder %s19, %s22
    %p31 = scmp.eq.s32.totalorder %s14, 1
    %p32 = por %p30, %p31
    %p33 = scmp.ne.s32.totalorder %s22, %s23
    %p34 = scmp.eq.s32.totalorder %s14, 0
    %p35 = por %p33, %p34
    %p36 = scmp.ne.s32.totalorder %s22, %s23
    %p37 = scmp.eq.s32.totalorder %s15, 1
    %p38 = por %p36, %p37
    %p40 = scmp.ne.s32.totalorder %s23, %s39
    %p41 = scmp.eq.s32.totalorder %s15, 0
    %p42 = por %p40, %p41
    %s44 = sadd.s32 %s43, 1
    %p47 = scmp.eq.s32.totalorder %s9, 1
    %p48 = scmp.ne.s32.totalorder %s43, %s45
    %p49 = scmp.eq.s32.totalorder %s9, 0
    %p50 = por %p48, %p49
    %p51 = scmp.ne.s32.totalorder %s43, %s45
    %p52 = scmp.eq.s32.totalorder %s14, 1
    %p53 = por %p51, %p52
    %p54 = scmp.ne.s32.totalorder %s45, %s46
    %p55 = scmp.eq.s32.totalorder %s14, 0
    %p56 = por %p54, %p55
    %p57 = scmp.ne.s32.totalorder %s45, %s46
    %p58 = scmp.eq.s32.totalorder %s15, 1
    %p59 = por %p57, %p58
    %p61 = scmp.ne.s32.totalorder %s46, %s60
    %p62 = scmp.eq.s32.totalorder %s15, 0
    %p63 = por %p61, %p62
    %s65 = sadd.s32 %s64, 1
    %p68 = scmp.eq.s32.totalorder %s9, 1
    %p69 = scmp.ne.s32.totalorder %s64, %s66
    %p70 = scmp.eq.s32.totalorder %s9, 0
    %p71 = por %p69, %p70
    %p72 = scmp.ne.s32.totalorder %s64, %s66
    %p73 = scmp.eq.s32.totalorder %s14, 1
    %p74 = por %p72, %p73
    %p75 = scmp.ne.s32.totalorder %s66, %s67
    %p76 = scmp.eq.s32.totalorder %s14, 0
    %p77 = por %p75, %p76
    %p78 = scmp.ne.s32.totalorder %s66, %s67
    %p79 = scmp.eq.s32.totalorder %s15, 1
    %p80 = por %p78, %p79
    %p82 = scmp.ne.s32.totalorder %s67, %s81
    %p83 = scmp.eq.s32.totalorder %s15, 0
    %p84 = por %p82, %p83
    %s85 = ssub.s32 %s9, %s16
    %p86 = scmp.eq.s32.totalorder %s85, 0
    %s88 = sadd.s32 %s87, 1
    %s89 = scalar_select %p86, %s87, %s88
    %p92 = pneg %p86
    %p93 = scmp.eq.s32.totalorder %s9, 1
    %p94 = por %p92, %p93
    %p95 = scmp.ne.s32.totalorder %s87, %s90
    %p96 = scmp.eq.s32.totalorder %s9, 0
    %p97 = por %p95, %p96
    %p98 = scmp.ne.s32.totalorder %s87, %s90
    %p99 = scmp.eq.s32.totalorder %s14, 1
    %p100 = por %p98, %p99
    %p101 = scmp.ne.s32.totalorder %s90, %s91
    %p102 = scmp.eq.s32.totalorder %s14, 0
    %p103 = por %p101, %p102
    %p104 = scmp.ne.s32.totalorder %s90, %s91
    %p105 = scmp.eq.s32.totalorder %s15, 1
    %p106 = por %p104, %p105
    %p108 = scmp.ne.s32.totalorder %s91, %s107
    %p109 = scmp.eq.s32.totalorder %s15, 0
    %p110 = por %p108, %p109
    %p111 = scmp.le.s32.totalorder 1, %s9
    %p112 = scmp.lt.s32.totalorder %s9, 3
    %p113 = pnand %p111, %p112
    %p114 = pneg %p113
    // Predicated region
    $region9: #{_lambda_.5} parent=5 // pred_check
      _
    $region10: #{_lambda_.5} parent=5 // pred_check_branch
      %116 = sbr.rel (%p113) target = $region12
    $region11: #{_lambda_.5} parent=5 // pred_region
      %s117 = ssub.s32 %s9, 1
      // Predicated region
      $region13: #{_lambda_.5} parent=11 // pred_check
        %p118 = pneg %p56
      $region14: #{_lambda_.5} parent=11 // pred_check_branch
        %120 = sbr.rel (%p118) target = $region16
      $region15: #{_lambda_.5} parent=11 // pred_region
        _
      $region16: #{_lambda_.5} parent=11 // pred_fallthru
        _
      // Predicated region
      $region17: #{_lambda_.5} parent=11 // pred_check
        %p121 = pneg %p77
      $region18: #{_lambda_.5} parent=11 // pred_check_branch
        %123 = sbr.rel (%p121) target = $region20
      $region19: #{_lambda_.5} parent=11 // pred_region
        _
      $region20: #{_lambda_.5} parent=11 // pred_fallthru
        _
    $region12: #{_lambda_.5} parent=5 // pred_fallthru
      _
    %p124 = scmp.lt.s32.totalorder %s9, 2
    // Predicated region
    $region21: #{_lambda_.5} parent=5 // pred_check
      %p125 = pneg %p124
    $region22: #{_lambda_.5} parent=5 // pred_check_branch
      %127 = sbr.rel (%p125) target = $region24
    $region23: #{_lambda_.5} parent=5 // pred_region
      // Predicated region
      $region25: #{_lambda_.5} parent=23 // pred_check
        %p128 = pneg %p29
      $region26: #{_lambda_.5} parent=23 // pred_check_branch
        %130 = sbr.rel (%p128) target = $region28
      $region27: #{_lambda_.5} parent=23 // pred_region
        %s131 = smul.u32 8, %s9
        %p132 = scmp.lt.s32.totalorder %s131, 15
        %s133 = scalar_select %p132, %s131, 15
        %s134 = smul.addr %s133, 4
        %s135 = scalar_lea.vmem %s0, %s134
        %s136 = smul.u32 8, %s9
      $region28: #{_lambda_.5} parent=23 // pred_fallthru
        _
    $region24: #{_lambda_.5} parent=5 // pred_fallthru
      _
    %p137 = scmp.le.s32.totalorder 1, %s9
    %p138 = scmp.lt.s32.totalorder %s9, 3
    %p139 = pnand %p137, %p138
    %p140 = pneg %p139
    // Predicated region
    $region29: #{_lambda_.5} parent=5 // pred_check
      _
    $region30: #{_lambda_.5} parent=5 // pred_check_branch
      %142 = sbr.rel (%p139) target = $region32
    $region31: #{_lambda_.5} parent=5 // pred_region
      %s143 = ssub.s32 %s9, 1
      %s144 = smul.u32 8, %s14
      %p145 = scmp.lt.s32.totalorder %s144, 15
      %s146 = scalar_select %p145, %s144, 15
      %s147 = smul.addr %s146, 4
      %s148 = scalar_lea.vmem %s0, %s147
      %p149 = pneg %p35
      %p150 = pneg %p32
      %p151 = pneg %p56
      %p152 = pneg %p53
      %p153 = pneg %p77
      %p154 = pneg %p74
      %p155 = pneg %p103
      %p156 = pneg %p100
      %s157 = smul.u32 8, %s14
      %p158 = scmp.lt.s32.totalorder %s157, 15
      %s159 = scalar_select %p158, %s157, 15
      %s160 = smul.addr %s159, 4
      %s161 = scalar_lea.vmem %s3, %s160
      %s162 = smul.u32 8, %s14
      %p163 = scmp.lt.s32.totalorder %s162, 15
      %s164 = scalar_select %p163, %s162, 15
      %s165 = smul.addr %s164, 4
      %s166 = scalar_lea.vmem %s0, %s165
      %s167 = smul.u32 8, %s14
      %s168 = smul.u32 8, %s14
      %p169 = scmp.lt.s32.totalorder %s168, 15
      %s170 = scalar_select %p169, %s168, 15
      %s171 = smul.addr %s170, 4
      %s172 = scalar_lea.vmem %s3, %s171
      %s173 = smul.u32 8, %s14
      %v175 = vld [vmem:[%s166] sm:$0xf]
      %v176 = vld [vmem:[%s166 + $0x4] sm:$0xf]
      %v177 = vld [vmem:[%s166 + $0x8] sm:$0xf]
      %v178 = vld [vmem:[%s166 + $0xc] sm:$0xf]
      %v179 = vld [vmem:[%s166 + $0x10] sm:$0xf]
      %v180 = vld [vmem:[%s166 + $0x14] sm:$0xf]
      %v181 = vld [vmem:[%s166 + $0x18] sm:$0xf]
      %v182 = vld [vmem:[%s166 + $0x1c] sm:$0xf]
      %v183 = vld [vmem:[%s1] sm:$0xf]
      %v184 = vld [vmem:[%s1 + $0x4] sm:$0xf]
      %v185 = vld [vmem:[%s1 + $0x8] sm:$0xf]
      %v186 = vld [vmem:[%s1 + $0xc] sm:$0xf]
      %v187 = vld [vmem:[%s1 + $0x10] sm:$0xf]
      %v188 = vld [vmem:[%s1 + $0x14] sm:$0xf]
      %v189 = vld [vmem:[%s1 + $0x18] sm:$0xf]
      %v190 = vld [vmem:[%s1 + $0x1c] sm:$0xf]
      %v191 = vld [vmem:[%s2] sm:$0x1]
      %v193 = vlaneseq
      %v194 = vshrl.u32 %v193, 7
      %v195 = vsub.s32 0, %v194
      %v196 = vrot.slane %v191, %v195
      %v206 = vunpack.c.l.b16 %v175
      %v207 = vunpack.c.l.b16 %v176
      %v208 = vunpack.c.l.b16 %v177
      %v209 = vunpack.c.l.b16 %v178
      %v210 = vunpack.c.l.b16 %v179
      %v211 = vunpack.c.l.b16 %v180
      %v212 = vunpack.c.l.b16 %v181
      %v213 = vunpack.c.l.b16 %v182
      %v214 = vpack.c.b16 %v207, %v206
      %v215 = vpack.c.b16 %v209, %v208
      %v216 = vpack.c.b16 %v211, %v210
      %v217 = vpack.c.b16 %v213, %v212
      %v226 = vunpack.c.l.b16 %v183
      %v227 = vunpack.c.l.b16 %v184
      %v228 = vunpack.c.l.b16 %v185
      %v229 = vunpack.c.l.b16 %v186
      %v230 = vunpack.c.l.b16 %v187
      %v231 = vunpack.c.l.b16 %v188
      %v232 = vunpack.c.l.b16 %v189
      %v233 = vunpack.c.l.b16 %v190
      %v234 = vpack.c.b16 %v227, %v226
      %v235 = vpack.c.b16 %v229, %v228
      %v236 = vpack.c.b16 %v231, %v230
      %v237 = vpack.c.b16 %v233, %v232
      %vm242 = vcmask 523264
      %v244 = vsel %vm242, %v214, 0
      %v247 = vsel %vm242, %v215, 0
      %v250 = vsel %vm242, %v216, 0
      %v253 = vsel %vm242, %v217, 0
      %255 = vmatprep.subr.bf16.mxu0 0
      %256 = vmatpush1.bf16.msra.mxu0 %v234
      %257 = vmatprep.subr.bf16.mxu0 0
      %258 = vmatpush1.bf16.msra.mxu0 %v235
      %259 = vmatprep.subr.bf16.mxu0 0
      %260 = vmatpush1.bf16.msra.mxu0 %v236
      %261 = vmatprep.subr.bf16.mxu0 0
      %262 = vmatpush1.bf16.msra.mxu0 %v237
      %263 = vmatprep.subr.bf16.mxu0 0
      %264 = vmatpush1.bf16.msra.mxu0 0
      %265 = vmatprep.subr.bf16.mxu0 0
      %266 = vmatpush1.bf16.msra.mxu0 0
      %267 = vmatprep.subr.bf16.mxu0 0
      %268 = vmatpush1.bf16.msra.mxu0 0
      %269 = vmatprep.subr.bf16.mxu0 0
      %270 = vmatpush1.bf16.msra.mxu0 0
      %271 = vmatprep.subr.bf16.mxu0 0
      %272 = vmatpush1.bf16.msra.mxu0 0
      %273 = vmatprep.subr.bf16.mxu0 0
      %274 = vmatpush1.bf16.msra.mxu0 0
      %275 = vmatprep.subr.bf16.mxu0 0
      %276 = vmatpush1.bf16.msra.mxu0 0
      %277 = vmatprep.subr.bf16.mxu0 0
      %278 = vmatpush1.bf16.msra.mxu0 0
      %279 = vmatprep.subr.bf16.mxu0 0
      %280 = vmatpush1.bf16.msra.mxu0 0
      %281 = vmatprep.subr.bf16.mxu0 0
      %282 = vmatpush1.bf16.msra.mxu0 0
      %283 = vmatprep.subr.bf16.mxu0 0
      %284 = vmatpush1.bf16.msra.mxu0 0
      %285 = vmatprep.subr.bf16.mxu0 0
      %286 = vmatpush1.bf16.msra.mxu0 0
      %287 = vmatprep.mubr.bf16.mxu0 0
      %288 = vmatmul.mubr.bf16.gmra.mrb[0].mxu0 %v244
      %v289 = vpop.f32.mrb[0].mxu0
      %v290 = vadd.f32 %v196, %v289
      %v291 = vpop.f32.mrb[0].mxu0
      %v292 = vpop.f32.mrb[0].mxu0
      %v293 = vadd.f32 %v196, %v292
      %v294 = vpop.f32.mrb[0].mxu0
      %295 = vmatprep.mubr.bf16.mxu0 0
      %296 = vmatmul.mubr.bf16.gmra.mrb[0].mxu0 %v247
      %v297 = vpop.f32.mrb[0].mxu0
      %v298 = vadd.f32 %v196, %v297
      %v299 = vpop.f32.mrb[0].mxu0
      %v300 = vpop.f32.mrb[0].mxu0
      %v301 = vadd.f32 %v196, %v300
      %v302 = vpop.f32.mrb[0].mxu0
      %303 = vmatprep.mubr.bf16.mxu0 0
      %304 = vmatmul.mubr.bf16.gmra.mrb[0].mxu0 %v250
      %v305 = vpop.f32.mrb[0].mxu0
      %v306 = vadd.f32 %v196, %v305
      %v307 = vpop.f32.mrb[0].mxu0
      %v308 = vpop.f32.mrb[0].mxu0
      %v309 = vadd.f32 %v196, %v308
      %v310 = vpop.f32.mrb[0].mxu0
      %311 = vmatprep.mubr.bf16.mxu0 0
      %312 = vmatmul.mubr.bf16.gmra.mrb[0].mxu0 %v253
      %v313 = vpop.f32.mrb[0].mxu0
      %v314 = vadd.f32 %v196, %v313
      %v315 = vpop.f32.mrb[0].mxu0
      %v316 = vpop.f32.mrb[0].mxu0
      %v317 = vadd.f32 %v196, %v316
      %v318 = vpop.f32.mrb[0].mxu0
      %319 = vdwg.mxu0
      %v320 = vmul.f32 %v290, 0.2
      %v321 = vmul.f32 %v293, 0.2
      %v322 = vmul.f32 %v298, 0.2
      %v323 = vmul.f32 %v301, 0.2
      %v324 = vmul.f32 %v306, 0.2
      %v325 = vmul.f32 %v309, 0.2
      %v326 = vmul.f32 %v314, 0.2
      %v327 = vmul.f32 %v317, 0.2
      %v328 = vmax.f32 %v290, %v320
      %v329 = vmax.f32 %v293, %v321
      %v330 = vmax.f32 %v298, %v322
      %v331 = vmax.f32 %v301, %v323
      %v332 = vmax.f32 %v306, %v324
      %v333 = vmax.f32 %v309, %v325
      %v334 = vmax.f32 %v314, %v326
      %v335 = vmax.f32 %v317, %v327
      %v336 = vpack.c.bf16 %v329, %v328
      %v337 = vpack.c.bf16 %v331, %v330
      %v338 = vpack.c.bf16 %v333, %v332
      %v339 = vpack.c.bf16 %v335, %v334
      %v344 = vunpack.c.l.b16 %v336
      %v345 = vunpack.c.h.b16 %v336
      %v346 = vunpack.c.l.b16 %v337
      %v347 = vunpack.c.h.b16 %v337
      %v348 = vunpack.c.l.b16 %v338
      %v349 = vunpack.c.h.b16 %v338
      %v350 = vunpack.c.l.b16 %v339
      %v351 = vunpack.c.h.b16 %v339
      %v352 = vpack.c.b16 %v344, %v344
      %v353 = vpack.c.b16 %v345, %v345
      %v354 = vpack.c.b16 %v346, %v346
      %v355 = vpack.c.b16 %v347, %v347
      %v356 = vpack.c.b16 %v348, %v348
      %v357 = vpack.c.b16 %v349, %v349
      %v358 = vpack.c.b16 %v350, %v350
      %v359 = vpack.c.b16 %v351, %v351
      %vm368 = vcmask 60416
      %369 = vst.msk [vmem:[%s172] sm:$0xf] %vm368, %v352
      %370 = vst.msk [vmem:[%s172 + $0x4] sm:$0xf] %vm368, %v353
      %371 = vst.msk [vmem:[%s172 + $0x8] sm:$0xf] %vm368, %v354
      %372 = vst.msk [vmem:[%s172 + $0xc] sm:$0xf] %vm368, %v355
      %373 = vst.msk [vmem:[%s172 + $0x10] sm:$0xf] %vm368, %v356
      %374 = vst.msk [vmem:[%s172 + $0x14] sm:$0xf] %vm368, %v357
      %375 = vst.msk [vmem:[%s172 + $0x18] sm:$0xf] %vm368, %v358
      %376 = vst.msk [vmem:[%s172 + $0x1c] sm:$0xf] %vm368, %v359
      %s377 = smul.u32 8, %s14
      %p378 = scmp.lt.s32.totalorder %s377, 15
      %s379 = scalar_select %p378, %s377, 15
      %s380 = smul.addr %s379, 4
      %s381 = scalar_lea.vmem %s3, %s380
      // Predicated region
      $region33: #{_lambda_.5} parent=31 // pred_check
        %p382 = pneg %p100
      $region34: #{_lambda_.5} parent=31 // pred_check_branch
        %384 = sbr.rel (%p382) target = $region36
      $region35: #{_lambda_.5} parent=31 // pred_region
        %s385 = smul.u32 8, %s14
      $region36: #{_lambda_.5} parent=31 // pred_fallthru
        _
    $region32: #{_lambda_.5} parent=5 // pred_fallthru
      _
    %p386 = scmp.le.s32.totalorder 2, %s9
    // Predicated region
    $region37: #{_lambda_.5} parent=5 // pred_check
      %p387 = pneg %p386
    $region38: #{_lambda_.5} parent=5 // pred_check_branch
      %389 = sbr.rel (%p387) target = $region40
    $region39: #{_lambda_.5} parent=5 // pred_region
      %s390 = ssub.s32 %s9, 2
      // Predicated region
      $region41: #{_lambda_.5} parent=39 // pred_check
        %p391 = pneg %p106
      $region42: #{_lambda_.5} parent=39 // pred_check_branch
        %393 = sbr.rel (%p391) target = $region44
      $region43: #{_lambda_.5} parent=39 // pred_region
        %s394 = smul.u32 8, %s15
        %p395 = scmp.lt.s32.totalorder %s394, 15
        %s396 = scalar_select %p395, %s394, 15
        %s397 = smul.addr %s396, 4
        %s398 = scalar_lea.vmem %s3, %s397
      $region44: #{_lambda_.5} parent=39 // pred_fallthru
        _
    $region40: #{_lambda_.5} parent=5 // pred_fallthru
      _
  $region6: #{_lambda_.5} parent=0 // loop_footer
    %s13 = sadd.s32 1, %s9
  $region7: #{_lambda_.5} parent=0 // loop_footer_branch
    %8 = sbr.rel target = $region3
  $region8: #{_lambda_.5} parent=0 // loop_exit
    _

// kernel: _lambda_.6
$region0: #{_lambda_.6}
  #allocation0 [shape = 'u32[]', space=smem, size = 0x4, offset = 0x4, fixed_abs, tag = 'smem constant byte address 0x4 - core index']
  #allocation1 [shape = 'u32[144,128]{1,0:T(1,128)}', space=vmem, size = 0x12000, scoped, tag = 'internal scratch']
  %s0 = inlined_call_operand.vmem [shape: bf16[128,72], index: 0, kind: input, shape index: {}]
  %s1 = inlined_call_operand.vmem [shape: bf16[72,16], index: 1, kind: input, shape index: {}]
  %s2 = inlined_call_operand.vmem [shape: f32[1,16], index: 2, kind: input, shape index: {}]
  %s3 = inlined_call_operand.vmem [shape: bf16[128,16], index: 3, kind: output, shape index: {}]
  %s4 = sld [smem:[#allocation0]]
  $region45: #{_lambda_.6} parent=0
    _
  %s6 = ssub.s32 1, %s4
  %s7 = scalar_select 0, %s6, %s4
  loop: start=0, step=1, limit=4
  $region2: #{_lambda_.6} parent=0 // loop_pre_header
    _
  $region3: #{_lambda_.6} parent=0 // loop_header
    %s9 = sphi 0, %s13
    %p10 = scmp.ge.s32.totalorder %s9, 4
    %s19 = sphi 0, %s21
    %s22 = sphi 0, %s19
    %s23 = sphi 0, %s22
    %s39 = sphi 0, %s23
    %s43 = sphi 0, %s43
    %s45 = sphi 0, %s43
    %s46 = sphi 0, %s45
    %s60 = sphi 0, %s46
    %s64 = sphi 0, %s64
    %s66 = sphi 0, %s64
    %s67 = sphi 0, %s66
    %s81 = sphi 0, %s67
    %s87 = sphi 0, %s89
    %s90 = sphi 0, %s87
    %s91 = sphi 0, %s90
    %s107 = sphi 0, %s91
  $region4: #{_lambda_.6} parent=0 // loop_header_branch
    %12 = sbr.rel (%p10) target = $region8
  $region5: #{_lambda_.6} parent=0 // loop_body
    %s14 = ssub.s32 %s9, 1
    %s15 = ssub.s32 %s9, 2
    %s16 = sadd.s32 %s9, 1
    %s17 = ssub.s32 %s9, %s16
    %p18 = scmp.eq.s32.totalorder %s17, 0
    %s20 = sadd.s32 %s19, 1
    %s21 = scalar_select %p18, %s19, %s20
    %p24 = pneg %p18
    %p25 = scmp.eq.s32.totalorder %s9, 1
    %p26 = por %p24, %p25
    %p27 = scmp.ne.s32.totalorder %s19, %s22
    %p28 = scmp.eq.s32.totalorder %s9, 0
    %p29 = por %p27, %p28
    %p30 = scmp.ne.s32.totalorder %s19, %s22
    %p31 = scmp.eq.s32.totalorder %s14, 1
    %p32 = por %p30, %p31
    %p33 = scmp.ne.s32.totalorder %s22, %s23
    %p34 = scmp.eq.s32.totalorder %s14, 0
    %p35 = por %p33, %p34
    %p36 = scmp.ne.s32.totalorder %s22, %s23
    %p37 = scmp.eq.s32.totalorder %s15, 1
    %p38 = por %p36, %p37
    %p40 = scmp.ne.s32.totalorder %s23, %s39
    %p41 = scmp.eq.s32.totalorder %s15, 0
    %p42 = por %p40, %p41
    %s44 = sadd.s32 %s43, 1
    %p47 = scmp.eq.s32.totalorder %s9, 1
    %p48 = scmp.ne.s32.totalorder %s43, %s45
    %p49 = scmp.eq.s32.totalorder %s9, 0
    %p50 = por %p48, %p49
    %p51 = scmp.ne.s32.totalorder %s43, %s45
    %p52 = scmp.eq.s32.totalorder %s14, 1
    %p53 = por %p51, %p52
    %p54 = scmp.ne.s32.totalorder %s45, %s46
    %p55 = scmp.eq.s32.totalorder %s14, 0
    %p56 = por %p54, %p55
    %p57 = scmp.ne.s32.totalorder %s45, %s46
    %p58 = scmp.eq.s32.totalorder %s15, 1
    %p59 = por %p57, %p58
    %p61 = scmp.ne.s32.totalorder %s46, %s60
    %p62 = scmp.eq.s32.totalorder %s15, 0
    %p63 = por %p61, %p62
    %s65 = sadd.s32 %s64, 1
    %p68 = scmp.eq.s32.totalorder %s9, 1
    %p69 = scmp.ne.s32.totalorder %s64, %s66
    %p70 = scmp.eq.s32.totalorder %s9, 0
    %p71 = por %p69, %p70
    %p72 = scmp.ne.s32.totalorder %s64, %s66
    %p73 = scmp.eq.s32.totalorder %s14, 1
    %p74 = por %p72, %p73
    %p75 = scmp.ne.s32.totalorder %s66, %s67
    %p76 = scmp.eq.s32.totalorder %s14, 0
    %p77 = por %p75, %p76
    %p78 = scmp.ne.s32.totalorder %s66, %s67
    %p79 = scmp.eq.s32.totalorder %s15, 1
    %p80 = por %p78, %p79
    %p82 = scmp.ne.s32.totalorder %s67, %s81
    %p83 = scmp.eq.s32.totalorder %s15, 0
    %p84 = por %p82, %p83
    %s85 = ssub.s32 %s9, %s16
    %p86 = scmp.eq.s32.totalorder %s85, 0
    %s88 = sadd.s32 %s87, 1
    %s89 = scalar_select %p86, %s87, %s88
    %p92 = pneg %p86
    %p93 = scmp.eq.s32.totalorder %s9, 1
    %p94 = por %p92, %p93
    %p95 = scmp.ne.s32.totalorder %s87, %s90
    %p96 = scmp.eq.s32.totalorder %s9, 0
    %p97 = por %p95, %p96
    %p98 = scmp.ne.s32.totalorder %s87, %s90
    %p99 = scmp.eq.s32.totalorder %s14, 1
    %p100 = por %p98, %p99
    %p101 = scmp.ne.s32.totalorder %s90, %s91
    %p102 = scmp.eq.s32.totalorder %s14, 0
    %p103 = por %p101, %p102
    %p104 = scmp.ne.s32.totalorder %s90, %s91
    %p105 = scmp.eq.s32.totalorder %s15, 1
    %p106 = por %p104, %p105
    %p108 = scmp.ne.s32.totalorder %s91, %s107
    %p109 = scmp.eq.s32.totalorder %s15, 0
    %p110 = por %p108, %p109
    %p111 = scmp.le.s32.totalorder 1, %s9
    %p112 = scmp.lt.s32.totalorder %s9, 3
    %p113 = pnand %p111, %p112
    %p114 = pneg %p113
    // Predicated region
    $region9: #{_lambda_.6} parent=5 // pred_check
      _
    $region10: #{_lambda_.6} parent=5 // pred_check_branch
      %116 = sbr.rel (%p113) target = $region12
    $region11: #{_lambda_.6} parent=5 // pred_region
      %s117 = ssub.s32 %s9, 1
      // Predicated region
      $region13: #{_lambda_.6} parent=11 // pred_check
        %p118 = pneg %p56
      $region14: #{_lambda_.6} parent=11 // pred_check_branch
        %120 = sbr.rel (%p118) target = $region16
      $region15: #{_lambda_.6} parent=11 // pred_region
        _
      $region16: #{_lambda_.6} parent=11 // pred_fallthru
        _
      // Predicated region
      $region17: #{_lambda_.6} parent=11 // pred_check
        %p121 = pneg %p77
      $region18: #{_lambda_.6} parent=11 // pred_check_branch
        %123 = sbr.rel (%p121) target = $region20
      $region19: #{_lambda_.6} parent=11 // pred_region
        _
      $region20: #{_lambda_.6} parent=11 // pred_fallthru
        _
    $region12: #{_lambda_.6} parent=5 // pred_fallthru
      _
    %p124 = scmp.lt.s32.totalorder %s9, 2
    // Predicated region
    $region21: #{_lambda_.6} parent=5 // pred_check
      %p125 = pneg %p124
    $region22: #{_lambda_.6} parent=5 // pred_check_branch
      %127 = sbr.rel (%p125) target = $region24
    $region23: #{_lambda_.6} parent=5 // pred_region
      // Predicated region
      $region25: #{_lambda_.6} parent=23 // pred_check
        %p128 = pneg %p29
      $region26: #{_lambda_.6} parent=23 // pred_check_branch
        %130 = sbr.rel (%p128) target = $region28
      $region27: #{_lambda_.6} parent=23 // pred_region
        %s131 = smul.u32 8, %s9
        %p132 = scmp.lt.s32.totalorder %s131, 15
        %s133 = scalar_select %p132, %s131, 15
        %s134 = smul.addr %s133, 4
        %s135 = scalar_lea.vmem %s0, %s134
        %s136 = smul.u32 8, %s9
      $region28: #{_lambda_.6} parent=23 // pred_fallthru
        _
    $region24: #{_lambda_.6} parent=5 // pred_fallthru
      _
    %p137 = scmp.le.s32.totalorder 1, %s9
    %p138 = scmp.lt.s32.totalorder %s9, 3
    %p139 = pnand %p137, %p138
    %p140 = pneg %p139
    // Predicated region
    $region29: #{_lambda_.6} parent=5 // pred_check
      _
    $region30: #{_lambda_.6} parent=5 // pred_check_branch
      %142 = sbr.rel (%p139) target = $region32
    $region31: #{_lambda_.6} parent=5 // pred_region
      %s143 = ssub.s32 %s9, 1
      %s144 = smul.u32 8, %s14
      %p145 = scmp.lt.s32.totalorder %s144, 15
      %s146 = scalar_select %p145, %s144, 15
      %s147 = smul.addr %s146, 4
      %s148 = scalar_lea.vmem %s0, %s147
      %p149 = pneg %p35
      %p150 = pneg %p32
      %p151 = pneg %p56
      %p152 = pneg %p53
      %p153 = pneg %p77
      %p154 = pneg %p74
      %p155 = pneg %p103
      %p156 = pneg %p100
      %s157 = smul.u32 8, %s14
      %p158 = scmp.lt.s32.totalorder %s157, 15
      %s159 = scalar_select %p158, %s157, 15
      %s160 = smul.addr %s159, 4
      %s161 = scalar_lea.vmem %s3, %s160
      %s162 = smul.u32 8, %s14
      %p163 = scmp.lt.s32.totalorder %s162, 15
      %s164 = scalar_select %p163, %s162, 15
      %s165 = smul.addr %s164, 4
      %s166 = scalar_lea.vmem %s0, %s165
      %s167 = smul.u32 8, %s14
      %s168 = smul.u32 8, %s14
      %p169 = scmp.lt.s32.totalorder %s168, 15
      %s170 = scalar_select %p169, %s168, 15
      %s171 = smul.addr %s170, 4
      %s172 = scalar_lea.vmem %s3, %s171
      %s173 = smul.u32 8, %s14
      %v175 = vld [vmem:[%s166] sm:$0xf]
      %v176 = vld [vmem:[%s166 + $0x4] sm:$0xf]
      %v177 = vld [vmem:[%s166 + $0x8] sm:$0xf]
      %v178 = vld [vmem:[%s166 + $0xc] sm:$0xf]
      %v179 = vld [vmem:[%s166 + $0x10] sm:$0xf]
      %v180 = vld [vmem:[%s166 + $0x14] sm:$0xf]
      %v181 = vld [vmem:[%s166 + $0x18] sm:$0xf]
      %v182 = vld [vmem:[%s166 + $0x1c] sm:$0xf]
      %v183 = vld [vmem:[%s1] sm:$0xf]
      %v184 = vld [vmem:[%s1 + $0x4] sm:$0xf]
      %v185 = vld [vmem:[%s1 + $0x8] sm:$0xf]
      %v186 = vld [vmem:[%s1 + $0xc] sm:$0xf]
      %v187 = vld [vmem:[%s1 + $0x10] sm:$0xf]
      %v188 = vld [vmem:[%s1 + $0x14] sm:$0xf]
      %v189 = vld [vmem:[%s1 + $0x18] sm:$0xf]
      %v190 = vld [vmem:[%s1 + $0x1c] sm:$0xf]
      %v191 = vld [vmem:[%s1 + $0x20] sm:$0xf]
      %v192 = vld [vmem:[%s2] sm:$0x1]
      %v194 = vlaneseq
      %v195 = vshrl.u32 %v194, 7
      %v196 = vsub.s32 0, %v195
      %v197 = vrot.slane %v192, %v196
      %v207 = vunpack.c.l.b16 %v175
      %v208 = vunpack.c.l.b16 %v176
      %v209 = vunpack.c.l.b16 %v177
      %v210 = vunpack.c.l.b16 %v178
      %v211 = vunpack.c.l.b16 %v179
      %v212 = vunpack.c.l.b16 %v180
      %v213 = vunpack.c.l.b16 %v181
      %v214 = vunpack.c.l.b16 %v182
      %v215 = vpack.c.b16 %v208, %v207
      %v216 = vpack.c.b16 %v210, %v209
      %v217 = vpack.c.b16 %v212, %v211
      %v218 = vpack.c.b16 %v214, %v213
      %v228 = vunpack.c.l.b16 %v183
      %v229 = vunpack.c.l.b16 %v184
      %v230 = vunpack.c.l.b16 %v185
      %v231 = vunpack.c.l.b16 %v186
      %v232 = vunpack.c.l.b16 %v187
      %v233 = vunpack.c.l.b16 %v188
      %v234 = vunpack.c.l.b16 %v189
      %v235 = vunpack.c.l.b16 %v190
      %v236 = vunpack.c.l.b16 %v191
      %v237 = vpack.c.b16 %v229, %v228
      %v238 = vpack.c.b16 %v231, %v230
      %v239 = vpack.c.b16 %v233, %v232
      %v240 = vpack.c.b16 %v235, %v234
      %v241 = vpack.c.b16 %v236, %v236
      %vm246 = vcmask 588800
      %v248 = vsel %vm246, %v215, 0
      %v251 = vsel %vm246, %v216, 0
      %v254 = vsel %vm246, %v217, 0
      %v257 = vsel %vm246, %v218, 0
      %vm259 = vcmask 1043456
      %v261 = vsel %vm259, %v241, 0
      %263 = vmatprep.subr.bf16.mxu0 0
      %264 = vmatpush1.bf16.msra.mxu0 %v237
      %265 = vmatprep.subr.bf16.mxu0 0
      %266 = vmatpush1.bf16.msra.mxu0 %v238
      %267 = vmatprep.subr.bf16.mxu0 0
      %268 = vmatpush1.bf16.msra.mxu0 %v239
      %269 = vmatprep.subr.bf16.mxu0 0
      %270 = vmatpush1.bf16.msra.mxu0 %v240
      %271 = vmatprep.subr.bf16.mxu0 0
      %272 = vmatpush1.bf16.msra.mxu0 %v261
      %273 = vmatprep.subr.bf16.mxu0 0
      %274 = vmatpush1.bf16.msra.mxu0 0
      %275 = vmatprep.subr.bf16.mxu0 0
      %276 = vmatpush1.bf16.msra.mxu0 0
      %277 = vmatprep.subr.bf16.mxu0 0
      %278 = vmatpush1.bf16.msra.mxu0 0
      %279 = vmatprep.subr.bf16.mxu0 0
      %280 = vmatpush1.bf16.msra.mxu0 0
      %281 = vmatprep.subr.bf16.mxu0 0
      %282 = vmatpush1.bf16.msra.mxu0 0
      %283 = vmatprep.subr.bf16.mxu0 0
      %284 = vmatpush1.bf16.msra.mxu0 0
      %285 = vmatprep.subr.bf16.mxu0 0
      %286 = vmatpush1.bf16.msra.mxu0 0
      %287 = vmatprep.subr.bf16.mxu0 0
      %288 = vmatpush1.bf16.msra.mxu0 0
      %289 = vmatprep.subr.bf16.mxu0 0
      %290 = vmatpush1.bf16.msra.mxu0 0
      %291 = vmatprep.subr.bf16.mxu0 0
      %292 = vmatpush1.bf16.msra.mxu0 0
      %293 = vmatprep.subr.bf16.mxu0 0
      %294 = vmatpush1.bf16.msra.mxu0 0
      %295 = vmatprep.mubr.bf16.mxu0 0
      %296 = vmatmul.mubr.bf16.gmra.mrb[0].mxu0 %v248
      %v297 = vpop.f32.mrb[0].mxu0
      %v298 = vadd.f32 %v197, %v297
      %v299 = vpop.f32.mrb[0].mxu0
      %v300 = vpop.f32.mrb[0].mxu0
      %v301 = vadd.f32 %v197, %v300
      %v302 = vpop.f32.mrb[0].mxu0
      %303 = vmatprep.mubr.bf16.mxu0 0
      %304 = vmatmul.mubr.bf16.gmra.mrb[0].mxu0 %v251
      %v305 = vpop.f32.mrb[0].mxu0
      %v306 = vadd.f32 %v197, %v305
      %v307 = vpop.f32.mrb[0].mxu0
      %v308 = vpop.f32.mrb[0].mxu0
      %v309 = vadd.f32 %v197, %v308
      %v310 = vpop.f32.mrb[0].mxu0
      %311 = vmatprep.mubr.bf16.mxu0 0
      %312 = vmatmul.mubr.bf16.gmra.mrb[0].mxu0 %v254
      %v313 = vpop.f32.mrb[0].mxu0
      %v314 = vadd.f32 %v197, %v313
      %v315 = vpop.f32.mrb[0].mxu0
      %v316 = vpop.f32.mrb[0].mxu0
      %v317 = vadd.f32 %v197, %v316
      %v318 = vpop.f32.mrb[0].mxu0
      %319 = vmatprep.mubr.bf16.mxu0 0
      %320 = vmatmul.mubr.bf16.gmra.mrb[0].mxu0 %v257
      %v321 = vpop.f32.mrb[0].mxu0
      %v322 = vadd.f32 %v197, %v321
      %v323 = vpop.f32.mrb[0].mxu0
      %v324 = vpop.f32.mrb[0].mxu0
      %v325 = vadd.f32 %v197, %v324
      %v326 = vpop.f32.mrb[0].mxu0
      %327 = vdwg.mxu0
      %v328 = vmul.f32 %v298, 0.2
      %v329 = vmul.f32 %v301, 0.2
      %v330 = vmul.f32 %v306, 0.2
      %v331 = vmul.f32 %v309, 0.2
      %v332 = vmul.f32 %v314, 0.2
      %v333 = vmul.f32 %v317, 0.2
      %v334 = vmul.f32 %v322, 0.2
      %v335 = vmul.f32 %v325, 0.2
      %v336 = vmax.f32 %v298, %v328
      %v337 = vmax.f32 %v301, %v329
      %v338 = vmax.f32 %v306, %v330
      %v339 = vmax.f32 %v309, %v331
      %v340 = vmax.f32 %v314, %v332
      %v341 = vmax.f32 %v317, %v333
      %v342 = vmax.f32 %v322, %v334
      %v343 = vmax.f32 %v325, %v335
      %v344 = vpack.c.bf16 %v337, %v336
      %v345 = vpack.c.bf16 %v339, %v338
      %v346 = vpack.c.bf16 %v341, %v340
      %v347 = vpack.c.bf16 %v343, %v342
      %v352 = vunpack.c.l.b16 %v344
      %v353 = vunpack.c.h.b16 %v344
      %v354 = vunpack.c.l.b16 %v345
      %v355 = vunpack.c.h.b16 %v345
      %v356 = vunpack.c.l.b16 %v346
      %v357 = vunpack.c.h.b16 %v346
      %v358 = vunpack.c.l.b16 %v347
      %v359 = vunpack.c.h.b16 %v347
      %v360 = vpack.c.b16 %v352, %v352
      %v361 = vpack.c.b16 %v353, %v353
      %v362 = vpack.c.b16 %v354, %v354
      %v363 = vpack.c.b16 %v355, %v355
      %v364 = vpack.c.b16 %v356, %v356
      %v365 = vpack.c.b16 %v357, %v357
      %v366 = vpack.c.b16 %v358, %v358
      %v367 = vpack.c.b16 %v359, %v359
      %vm376 = vcmask 125952
      %377 = vst.msk [vmem:[%s172] sm:$0xf] %vm376, %v360
      %378 = vst.msk [vmem:[%s172 + $0x4] sm:$0xf] %vm376, %v361
      %379 = vst.msk [vmem:[%s172 + $0x8] sm:$0xf] %vm376, %v362
      %380 = vst.msk [vmem:[%s172 + $0xc] sm:$0xf] %vm376, %v363
      %381 = vst.msk [vmem:[%s172 + $0x10] sm:$0xf] %vm376, %v364
      %382 = vst.msk [vmem:[%s172 + $0x14] sm:$0xf] %vm376, %v365
      %383 = vst.msk [vmem:[%s172 + $0x18] sm:$0xf] %vm376, %v366
      %384 = vst.msk [vmem:[%s172 + $0x1c] sm:$0xf] %vm376, %v367
      %s385 = smul.u32 8, %s14
      %p386 = scmp.lt.s32.totalorder %s385, 15
      %s387 = scalar_select %p386, %s385, 15
      %s388 = smul.addr %s387, 4
      %s389 = scalar_lea.vmem %s3, %s388
      // Predicated region
      $region33: #{_lambda_.6} parent=31 // pred_check
        %p390 = pneg %p100
      $region34: #{_lambda_.6} parent=31 // pred_check_branch
        %392 = sbr.rel (%p390) target = $region36
      $region35: #{_lambda_.6} parent=31 // pred_region
        %s393 = smul.u32 8, %s14
      $region36: #{_lambda_.6} parent=31 // pred_fallthru
        _
    $region32: #{_lambda_.6} parent=5 // pred_fallthru
      _
    %p394 = scmp.le.s32.totalorder 2, %s9
    // Predicated region
    $region37: #{_lambda_.6} parent=5 // pred_check
      %p395 = pneg %p394
    $region38: #{_lambda_.6} parent=5 // pred_check_branch
      %397 = sbr.rel (%p395) target = $region40
    $region39: #{_lambda_.6} parent=5 // pred_region
      %s398 = ssub.s32 %s9, 2
      // Predicated region
      $region41: #{_lambda_.6} parent=39 // pred_check
        %p399 = pneg %p106
      $region42: #{_lambda_.6} parent=39 // pred_check_branch
        %401 = sbr.rel (%p399) target = $region44
      $region43: #{_lambda_.6} parent=39 // pred_region
        %s402 = smul.u32 8, %s15
        %p403 = scmp.lt.s32.totalorder %s402, 15
        %s404 = scalar_select %p403, %s402, 15
        %s405 = smul.addr %s404, 4
        %s406 = scalar_lea.vmem %s3, %s405
      $region44: #{_lambda_.6} parent=39 // pred_fallthru
        _
    $region40: #{_lambda_.6} parent=5 // pred_fallthru
      _
  $region6: #{_lambda_.6} parent=0 // loop_footer
    %s13 = sadd.s32 1, %s9
  $region7: #{_lambda_.6} parent=0 // loop_footer_branch
    %8 = sbr.rel target = $region3
  $region8: #{_lambda_.6} parent=0 // loop_exit
    _

// kernel: _lambda_.7
$region0: #{_lambda_.7}
  #allocation0 [shape = 'u32[]', space=smem, size = 0x4, offset = 0x4, fixed_abs, tag = 'smem constant byte address 0x4 - core index']
  #allocation1 [shape = 'u32[144,128]{1,0:T(1,128)}', space=vmem, size = 0x12000, scoped, tag = 'internal scratch']
  #allocation2 [shape = 'f32[1,1]{1,0:T(1,128)S(1)}', space=vmem, size = 0x200, scoped, tag = 'scoped memory for _lambda_.7']
  %s0 = inlined_call_operand.vmem [shape: bf16[32,144], index: 0, kind: input, shape index: {}]
  %s1 = inlined_call_operand.vmem [shape: bf16[144,16], index: 1, kind: input, shape index: {}]
  %s2 = inlined_call_operand.vmem [shape: f32[1,16], index: 2, kind: input, shape index: {}]
  %s3 = inlined_call_operand.vmem [shape: f32[1,16], index: 3, kind: input, shape index: {}]
  %s4 = inlined_call_operand.<no memory space> [shape: f32[1,1], index: 4, kind: input, shape index: {}]
  %s5 = inlined_call_operand.vmem [shape: bf16[32,16], index: 5, kind: output, shape index: {0}]
  %s6 = inlined_call_operand.vmem [shape: f32[32,1], index: 6, kind: output, shape index: {1}]
  %7 = xla_tuple %s5, %s6
  %s8 = sld [smem:[#allocation0]]
  $region38: #{_lambda_.7} parent=0
    _
  %s10 = ssub.s32 1, %s8
  %s11 = scalar_select 0, %s10, %s8
  %v12 = vstv %s4
  %13 = vst [vmem:[#allocation2] sm:$0x1] %v12
  // Predicated region
  $region2: #{_lambda_.7} parent=0 // pred_check
    _
  $region3: #{_lambda_.7} parent=0 // pred_check_branch
    %15 = sbr.rel (0) target = $region5
  $region4: #{_lambda_.7} parent=0 // pred_region
    _
  $region5: #{_lambda_.7} parent=0 // pred_fallthru
    _
  // Predicated region
  $region6: #{_lambda_.7} parent=0 // pred_check
    _
  $region7: #{_lambda_.7} parent=0 // pred_check_branch
    %17 = sbr.rel (0) target = $region9
  $region8: #{_lambda_.7} parent=0 // pred_region
    _
  $region9: #{_lambda_.7} parent=0 // pred_fallthru
    _
  // Predicated region
  $region10: #{_lambda_.7} parent=0 // pred_check
    _
  $region11: #{_lambda_.7} parent=0 // pred_check_branch
    %19 = sbr.rel (0) target = $region13
  $region12: #{_lambda_.7} parent=0 // pred_region
    _
  $region13: #{_lambda_.7} parent=0 // pred_fallthru
    _
  // Predicated region
  $region14: #{_lambda_.7} parent=0 // pred_check
    _
  $region15: #{_lambda_.7} parent=0 // pred_check_branch
    %21 = sbr.rel (0) target = $region17
  $region16: #{_lambda_.7} parent=0 // pred_region
    _
  $region17: #{_lambda_.7} parent=0 // pred_fallthru
    _
  // Predicated region
  $region18: #{_lambda_.7} parent=0 // pred_check
    _
  $region19: #{_lambda_.7} parent=0 // pred_check_branch
    %23 = sbr.rel (0) target = $region21
  $region20: #{_lambda_.7} parent=0 // pred_region
    _
  $region21: #{_lambda_.7} parent=0 // pred_fallthru
    _
  %v25 = vld [vmem:[%s0] sm:$0xff]
  %v26 = vld [vmem:[%s0 + $0x8] sm:$0xff]
  %v27 = vld [vmem:[%s0 + $0x10] sm:$0xff]
  %v28 = vld [vmem:[%s0 + $0x18] sm:$0xff]
  %v29 = vld [vmem:[%s1] sm:$0xf]
  %v30 = vld [vmem:[%s1 + $0x4] sm:$0xf]
  %v31 = vld [vmem:[%s1 + $0x8] sm:$0xf]
  %v32 = vld [vmem:[%s1 + $0xc] sm:$0xf]
  %v33 = vld [vmem:[%s1 + $0x10] sm:$0xf]
  %v34 = vld [vmem:[%s1 + $0x14] sm:$0xf]
  %v35 = vld [vmem:[%s1 + $0x18] sm:$0xf]
  %v36 = vld [vmem:[%s1 + $0x1c] sm:$0xf]
  %v37 = vld [vmem:[%s1 + $0x20] sm:$0xf]
  %v38 = vld [vmem:[%s1 + $0x24] sm:$0xf]
  %v39 = vld [vmem:[%s1 + $0x28] sm:$0xf]
  %v40 = vld [vmem:[%s1 + $0x2c] sm:$0xf]
  %v41 = vld [vmem:[%s1 + $0x30] sm:$0xf]
  %v42 = vld [vmem:[%s1 + $0x34] sm:$0xf]
  %v43 = vld [vmem:[%s1 + $0x38] sm:$0xf]
  %v44 = vld [vmem:[%s1 + $0x3c] sm:$0xf]
  %v45 = vld [vmem:[%s1 + $0x40] sm:$0xf]
  %v46 = vld [vmem:[%s1 + $0x44] sm:$0xf]
  %v47 = vld [vmem:[%s2] sm:$0x1]
  %v49 = vlaneseq
  %v50 = vshrl.u32 %v49, 7
  %v51 = vsub.s32 0, %v50
  %v52 = vrot.slane %v47, %v51
  %v58 = vunpack.c.l.b16 %v25
  %v59 = vunpack.c.h.b16 %v25
  %v60 = vunpack.c.l.b16 %v26
  %v61 = vunpack.c.h.b16 %v26
  %v62 = vunpack.c.l.b16 %v27
  %v63 = vunpack.c.h.b16 %v27
  %v64 = vunpack.c.l.b16 %v28
  %v65 = vunpack.c.h.b16 %v28
  %v66 = vpack.c.b16 %v60, %v58
  %v67 = vpack.c.b16 %v61, %v59
  %v68 = vpack.c.b16 %v64, %v62
  %v69 = vpack.c.b16 %v65, %v63
  %v90 = vunpack.c.l.b16 %v29
  %v91 = vunpack.c.l.b16 %v30
  %v92 = vunpack.c.l.b16 %v31
  %v93 = vunpack.c.l.b16 %v32
  %v94 = vunpack.c.l.b16 %v33
  %v95 = vunpack.c.l.b16 %v34
  %v96 = vunpack.c.l.b16 %v35
  %v97 = vunpack.c.l.b16 %v36
  %v98 = vunpack.c.l.b16 %v37
  %v99 = vunpack.c.l.b16 %v38
  %v100 = vunpack.c.l.b16 %v39
  %v101 = vunpack.c.l.b16 %v40
  %v102 = vunpack.c.l.b16 %v41
  %v103 = vunpack.c.l.b16 %v42
  %v104 = vunpack.c.l.b16 %v43
  %v105 = vunpack.c.l.b16 %v44
  %v106 = vunpack.c.l.b16 %v45
  %v107 = vunpack.c.l.b16 %v46
  %v108 = vpack.c.b16 %v91, %v90
  %v109 = vpack.c.b16 %v93, %v92
  %v110 = vpack.c.b16 %v95, %v94
  %v111 = vpack.c.b16 %v97, %v96
  %v112 = vpack.c.b16 %v99, %v98
  %v113 = vpack.c.b16 %v101, %v100
  %v114 = vpack.c.b16 %v103, %v102
  %v115 = vpack.c.b16 %v105, %v104
  %v116 = vpack.c.b16 %v107, %v106
  %vm126 = vcmask 130048
  %v128 = vsel %vm126, %v67, 0
  %v131 = vsel %vm126, %v69, 0
  %133 = vmatprep.subr.bf16.mxu0 0
  %134 = vmatpush1.bf16.msra.mxu0 %v108
  %135 = vmatprep.subr.bf16.mxu0 0
  %136 = vmatpush1.bf16.msra.mxu0 %v109
  %137 = vmatprep.subr.bf16.mxu0 0
  %138 = vmatpush1.bf16.msra.mxu0 %v110
  %139 = vmatprep.subr.bf16.mxu0 0
  %140 = vmatpush1.bf16.msra.mxu0 %v111
  %141 = vmatprep.subr.bf16.mxu0 0
  %142 = vmatpush1.bf16.msra.mxu0 %v112
  %143 = vmatprep.subr.bf16.mxu0 0
  %144 = vmatpush1.bf16.msra.mxu0 %v113
  %145 = vmatprep.subr.bf16.mxu0 0
  %146 = vmatpush1.bf16.msra.mxu0 %v114
  %147 = vmatprep.subr.bf16.mxu0 0
  %148 = vmatpush1.bf16.msra.mxu0 %v115
  %149 = vmatprep.subr.bf16.mxu0 0
  %150 = vmatpush1.bf16.msra.mxu0 %v116
  %151 = vmatprep.subr.bf16.mxu0 0
  %152 = vmatpush1.bf16.msra.mxu0 0
  %153 = vmatprep.subr.bf16.mxu0 0
  %154 = vmatpush1.bf16.msra.mxu0 0
  %155 = vmatprep.subr.bf16.mxu0 0
  %156 = vmatpush1.bf16.msra.mxu0 0
  %157 = vmatprep.subr.bf16.mxu0 0
  %158 = vmatpush1.bf16.msra.mxu0 0
  %159 = vmatprep.subr.bf16.mxu0 0
  %160 = vmatpush1.bf16.msra.mxu0 0
  %161 = vmatprep.subr.bf16.mxu0 0
  %162 = vmatpush1.bf16.msra.mxu0 0
  %163 = vmatprep.subr.bf16.mxu0 0
  %164 = vmatpush1.bf16.msra.mxu0 0
  %165 = vmatprep.mubr.bf16.mxu0 %v128
  %166 = vmatmul.mubr.bf16.gmra.mrb[0].mxu0 %v66
  %v167 = vpop.f32.mrb[0].mxu0
  %v168 = vadd.f32 %v52, %v167
  %v169 = vpop.f32.mrb[0].mxu0
  %v170 = vpop.f32.mrb[0].mxu0
  %v171 = vadd.f32 %v52, %v170
  %v172 = vpop.f32.mrb[0].mxu0
  %173 = vmatprep.mubr.bf16.mxu0 %v131
  %174 = vmatmul.mubr.bf16.gmra.mrb[0].mxu0 %v68
  %v175 = vpop.f32.mrb[0].mxu0
  %v176 = vadd.f32 %v52, %v175
  %v177 = vpop.f32.mrb[0].mxu0
  %v178 = vpop.f32.mrb[0].mxu0
  %v179 = vadd.f32 %v52, %v178
  %v180 = vpop.f32.mrb[0].mxu0
  %181 = vdwg.mxu0
  %v182 = vmul.f32 %v168, 0.2
  %v183 = vmul.f32 %v171, 0.2
  %v184 = vmul.f32 %v176, 0.2
  %v185 = vmul.f32 %v179, 0.2
  %v186 = vmax.f32 %v168, %v182
  %v187 = vmax.f32 %v171, %v183
  %v188 = vmax.f32 %v176, %v184
  %v189 = vmax.f32 %v179, %v185
  %v190 = vpack.c.bf16 %v187, %v186
  %v191 = vpack.c.bf16 %v189, %v188
  %v194 = vunpack.c.l.b16 %v190
  %v195 = vunpack.c.h.b16 %v190
  %v196 = vunpack.c.l.b16 %v191
  %v197 = vunpack.c.h.b16 %v191
  %v198 = vpack.c.b16 %v194, %v194
  %v199 = vpack.c.b16 %v195, %v195
  %v200 = vpack.c.b16 %v196, %v196
  %v201 = vpack.c.b16 %v197, %v197
  %vm206 = vcmask 125952
  %207 = vst.msk [vmem:[%s5] sm:$0xf] %vm206, %v198
  %208 = vst.msk [vmem:[%s5 + $0x4] sm:$0xf] %vm206, %v199
  %209 = vst.msk [vmem:[%s5 + $0x8] sm:$0xf] %vm206, %v200
  %210 = vst.msk [vmem:[%s5 + $0xc] sm:$0xf] %vm206, %v201
  %v211 = vld [vmem:[%s3] sm:$0x1]
  %v213 = vlaneseq
  %v214 = vshrl.u32 %v213, 7
  %v215 = vsub.s32 0, %v214
  %v216 = vrot.slane %v211, %v215
  %v218 = vmul.f32 %v186, %v216
  %v219 = vmul.f32 %v187, %v216
  %v220 = vmul.f32 %v188, %v216
  %v221 = vmul.f32 %v189, %v216
  %v222 = vsel %vm126, %v218, 0.0
  %223 = vadd.xlane.f32.xlu0 %v222
  %v224 = vpop.xlane.xlu0 %223
  %v225 = vsel %vm126, %v219, 0.0
  %226 = vadd.xlane.f32.xlu0 %v225
  %v227 = vpop.xlane.xlu0 %226
  %v228 = vsel %vm126, %v220, 0.0
  %229 = vadd.xlane.f32.xlu0 %v228
  %v230 = vpop.xlane.xlu0 %229
  %v231 = vsel %vm126, %v221, 0.0
  %232 = vadd.xlane.f32.xlu0 %v231
  %v233 = vpop.xlane.xlu0 %232
  %v234 = vld [vmem:[#allocation2] sm:$0x1]
  %v236 = vlaneseq
  %v237 = vshrl.u32 %v236, 7
  %v238 = vsub.s32 0, %v237
  %v239 = vrot.slane %v234, %v238
  %v241 = vadd.f32 %v224, %v239
  %v242 = vadd.f32 %v227, %v239
  %v243 = vadd.f32 %v230, %v239
  %v244 = vadd.f32 %v233, %v239
  %vm245 = vcmask 7168
  %246 = vst.msk [vmem:[%s6] sm:$0xff] %vm245, %v241
  %247 = vst.msk [vmem:[%s6 + $0x8] sm:$0xff] %vm245, %v242
  %248 = vst.msk [vmem:[%s6 + $0x10] sm:$0xff] %vm245, %v243
  %249 = vst.msk [vmem:[%s6 + $0x18] sm:$0xff] %vm245, %v244
  // Predicated region
  $region22: #{_lambda_.7} parent=0 // pred_check
    _
  $region23: #{_lambda_.7} parent=0 // pred_check_branch
    %251 = sbr.rel (0) target = $region25
  $region24: #{_lambda_.7} parent=0 // pred_region
    _
  $region25: #{_lambda_.7} parent=0 // pred_fallthru
    _
  // Predicated region
  $region26: #{_lambda_.7} parent=0 // pred_check
    _
  $region27: #{_lambda_.7} parent=0 // pred_check_branch
    %253 = sbr.rel (0) target = $region29
  $region28: #{_lambda_.7} parent=0 // pred_region
    _
  $region29: #{_lambda_.7} parent=0 // pred_fallthru
    _
  // Predicated region
  $region30: #{_lambda_.7} parent=0 // pred_check
    _
  $region31: #{_lambda_.7} parent=0 // pred_check_branch
    %255 = sbr.rel (0) target = $region33
  $region32: #{_lambda_.7} parent=0 // pred_region
    _
  $region33: #{_lambda_.7} parent=0 // pred_fallthru
    _
  // Predicated region
  $region34: #{_lambda_.7} parent=0 // pred_check
    _
  $region35: #{_lambda_.7} parent=0 // pred_check_branch
    %257 = sbr.rel (0) target = $region37
  $region36: #{_lambda_.7} parent=0 // pred_region
    _
  $region37: #{_lambda_.7} parent=0 // pred_fallthru
    _

// kernel: _lambda_.8
$region0: #{_lambda_.8}
  #allocation0 [shape = 'u32[]', space=smem, size = 0x4, offset = 0x4, fixed_abs, tag = 'smem constant byte address 0x4 - core index']
  #allocation1 [shape = 'u32[144,128]{1,0:T(1,128)}', space=vmem, size = 0x12000, scoped, tag = 'internal scratch']
  %s0 = inlined_call_operand.vmem [shape: bf16[32,144], index: 0, kind: input, shape index: {}]
  %s1 = inlined_call_operand.vmem [shape: bf16[144,32], index: 1, kind: input, shape index: {}]
  %s2 = inlined_call_operand.vmem [shape: f32[1,32], index: 2, kind: input, shape index: {}]
  %s3 = inlined_call_operand.vmem [shape: bf16[32,32], index: 3, kind: output, shape index: {}]
  %s4 = sld [smem:[#allocation0]]
  $region22: #{_lambda_.8} parent=0
    _
  %s6 = ssub.s32 1, %s4
  %s7 = scalar_select 0, %s6, %s4
  // Predicated region
  $region2: #{_lambda_.8} parent=0 // pred_check
    _
  $region3: #{_lambda_.8} parent=0 // pred_check_branch
    %9 = sbr.rel (0) target = $region5
  $region4: #{_lambda_.8} parent=0 // pred_region
    _
  $region5: #{_lambda_.8} parent=0 // pred_fallthru
    _
  // Predicated region
  $region6: #{_lambda_.8} parent=0 // pred_check
    _
  $region7: #{_lambda_.8} parent=0 // pred_check_branch
    %11 = sbr.rel (0) target = $region9
  $region8: #{_lambda_.8} parent=0 // pred_region
    _
  $region9: #{_lambda_.8} parent=0 // pred_fallthru
    _
  // Predicated region
  $region10: #{_lambda_.8} parent=0 // pred_check
    _
  $region11: #{_lambda_.8} parent=0 // pred_check_branch
    %13 = sbr.rel (0) target = $region13
  $region12: #{_lambda_.8} parent=0 // pred_region
    _
  $region13: #{_lambda_.8} parent=0 // pred_fallthru
    _
  %v15 = vld [vmem:[%s0] sm:$0xff]
  %v16 = vld [vmem:[%s0 + $0x8] sm:$0xff]
  %v17 = vld [vmem:[%s0 + $0x10] sm:$0xff]
  %v18 = vld [vmem:[%s0 + $0x18] sm:$0xff]
  %v19 = vld [vmem:[%s1] sm:$0xf]
  %v20 = vld [vmem:[%s1 + $0x4] sm:$0xf]
  %v21 = vld [vmem:[%s1 + $0x8] sm:$0xf]
  %v22 = vld [vmem:[%s1 + $0xc] sm:$0xf]
  %v23 = vld [vmem:[%s1 + $0x10] sm:$0xf]
  %v24 = vld [vmem:[%s1 + $0x14] sm:$0xf]
  %v25 = vld [vmem:[%s1 + $0x18] sm:$0xf]
  %v26 = vld [vmem:[%s1 + $0x1c] sm:$0xf]
  %v27 = vld [vmem:[%s1 + $0x20] sm:$0xf]
  %v28 = vld [vmem:[%s1 + $0x24] sm:$0xf]
  %v29 = vld [vmem:[%s1 + $0x28] sm:$0xf]
  %v30 = vld [vmem:[%s1 + $0x2c] sm:$0xf]
  %v31 = vld [vmem:[%s1 + $0x30] sm:$0xf]
  %v32 = vld [vmem:[%s1 + $0x34] sm:$0xf]
  %v33 = vld [vmem:[%s1 + $0x38] sm:$0xf]
  %v34 = vld [vmem:[%s1 + $0x3c] sm:$0xf]
  %v35 = vld [vmem:[%s1 + $0x40] sm:$0xf]
  %v36 = vld [vmem:[%s1 + $0x44] sm:$0xf]
  %v37 = vld [vmem:[%s2] sm:$0x1]
  %v39 = vlaneseq
  %v40 = vshrl.u32 %v39, 7
  %v41 = vsub.s32 0, %v40
  %v42 = vrot.slane %v37, %v41
  %v48 = vunpack.c.l.b16 %v15
  %v49 = vunpack.c.h.b16 %v15
  %v50 = vunpack.c.l.b16 %v16
  %v51 = vunpack.c.h.b16 %v16
  %v52 = vunpack.c.l.b16 %v17
  %v53 = vunpack.c.h.b16 %v17
  %v54 = vunpack.c.l.b16 %v18
  %v55 = vunpack.c.h.b16 %v18
  %v56 = vpack.c.b16 %v50, %v48
  %v57 = vpack.c.b16 %v51, %v49
  %v58 = vpack.c.b16 %v54, %v52
  %v59 = vpack.c.b16 %v55, %v53
  %v80 = vunpack.c.l.b16 %v19
  %v81 = vunpack.c.l.b16 %v20
  %v82 = vunpack.c.l.b16 %v21
  %v83 = vunpack.c.l.b16 %v22
  %v84 = vunpack.c.l.b16 %v23
  %v85 = vunpack.c.l.b16 %v24
  %v86 = vunpack.c.l.b16 %v25
  %v87 = vunpack.c.l.b16 %v26
  %v88 = vunpack.c.l.b16 %v27
  %v89 = vunpack.c.l.b16 %v28
  %v90 = vunpack.c.l.b16 %v29
  %v91 = vunpack.c.l.b16 %v30
  %v92 = vunpack.c.l.b16 %v31
  %v93 = vunpack.c.l.b16 %v32
  %v94 = vunpack.c.l.b16 %v33
  %v95 = vunpack.c.l.b16 %v34
  %v96 = vunpack.c.l.b16 %v35
  %v97 = vunpack.c.l.b16 %v36
  %v98 = vpack.c.b16 %v81, %v80
  %v99 = vpack.c.b16 %v83, %v82
  %v100 = vpack.c.b16 %v85, %v84
  %v101 = vpack.c.b16 %v87, %v86
  %v102 = vpack.c.b16 %v89, %v88
  %v103 = vpack.c.b16 %v91, %v90
  %v104 = vpack.c.b16 %v93, %v92
  %v105 = vpack.c.b16 %v95, %v94
  %v106 = vpack.c.b16 %v97, %v96
  %vm116 = vcmask 130048
  %v118 = vsel %vm116, %v57, 0
  %v121 = vsel %vm116, %v59, 0
  %123 = vmatprep.subr.bf16.mxu0 0
  %124 = vmatpush1.bf16.msra.mxu0 %v98
  %125 = vmatprep.subr.bf16.mxu0 0
  %126 = vmatpush1.bf16.msra.mxu0 %v99
  %127 = vmatprep.subr.bf16.mxu0 0
  %128 = vmatpush1.bf16.msra.mxu0 %v100
  %129 = vmatprep.subr.bf16.mxu0 0
  %130 = vmatpush1.bf16.msra.mxu0 %v101
  %131 = vmatprep.subr.bf16.mxu0 0
  %132 = vmatpush1.bf16.msra.mxu0 %v102
  %133 = vmatprep.subr.bf16.mxu0 0
  %134 = vmatpush1.bf16.msra.mxu0 %v103
  %135 = vmatprep.subr.bf16.mxu0 0
  %136 = vmatpush1.bf16.msra.mxu0 %v104
  %137 = vmatprep.subr.bf16.mxu0 0
  %138 = vmatpush1.bf16.msra.mxu0 %v105
  %139 = vmatprep.subr.bf16.mxu0 0
  %140 = vmatpush1.bf16.msra.mxu0 %v106
  %141 = vmatprep.subr.bf16.mxu0 0
  %142 = vmatpush1.bf16.msra.mxu0 0
  %143 = vmatprep.subr.bf16.mxu0 0
  %144 = vmatpush1.bf16.msra.mxu0 0
  %145 = vmatprep.subr.bf16.mxu0 0
  %146 = vmatpush1.bf16.msra.mxu0 0
  %147 = vmatprep.subr.bf16.mxu0 0
  %148 = vmatpush1.bf16.msra.mxu0 0
  %149 = vmatprep.subr.bf16.mxu0 0
  %150 = vmatpush1.bf16.msra.mxu0 0
  %151 = vmatprep.subr.bf16.mxu0 0
  %152 = vmatpush1.bf16.msra.mxu0 0
  %153 = vmatprep.subr.bf16.mxu0 0
  %154 = vmatpush1.bf16.msra.mxu0 0
  %155 = vmatprep.mubr.bf16.mxu0 %v118
  %156 = vmatmul.mubr.bf16.gmra.mrb[0].mxu0 %v56
  %v157 = vpop.f32.mrb[0].mxu0
  %v158 = vadd.f32 %v42, %v157
  %v159 = vpop.f32.mrb[0].mxu0
  %v160 = vpop.f32.mrb[0].mxu0
  %v161 = vadd.f32 %v42, %v160
  %v162 = vpop.f32.mrb[0].mxu0
  %163 = vmatprep.mubr.bf16.mxu0 %v121
  %164 = vmatmul.mubr.bf16.gmra.mrb[0].mxu0 %v58
  %v165 = vpop.f32.mrb[0].mxu0
  %v166 = vadd.f32 %v42, %v165
  %v167 = vpop.f32.mrb[0].mxu0
  %v168 = vpop.f32.mrb[0].mxu0
  %v169 = vadd.f32 %v42, %v168
  %v170 = vpop.f32.mrb[0].mxu0
  %171 = vdwg.mxu0
  %v172 = vmul.f32 %v158, 0.2
  %v173 = vmul.f32 %v161, 0.2
  %v174 = vmul.f32 %v166, 0.2
  %v175 = vmul.f32 %v169, 0.2
  %v176 = vmax.f32 %v158, %v172
  %v177 = vmax.f32 %v161, %v173
  %v178 = vmax.f32 %v166, %v174
  %v179 = vmax.f32 %v169, %v175
  %v180 = vpack.c.bf16 %v177, %v176
  %v181 = vpack.c.bf16 %v179, %v178
  %v184 = vunpack.c.l.b16 %v180
  %v185 = vunpack.c.h.b16 %v180
  %v186 = vunpack.c.l.b16 %v181
  %v187 = vunpack.c.h.b16 %v181
  %v188 = vpack.c.b16 %v184, %v184
  %v189 = vpack.c.b16 %v185, %v185
  %v190 = vpack.c.b16 %v186, %v186
  %v191 = vpack.c.b16 %v187, %v187
  %vm196 = vcmask 257024
  %197 = vst.msk [vmem:[%s3] sm:$0xf] %vm196, %v188
  %198 = vst.msk [vmem:[%s3 + $0x4] sm:$0xf] %vm196, %v189
  %199 = vst.msk [vmem:[%s3 + $0x8] sm:$0xf] %vm196, %v190
  %200 = vst.msk [vmem:[%s3 + $0xc] sm:$0xf] %vm196, %v191
  // Predicated region
  $region14: #{_lambda_.8} parent=0 // pred_check
    _
  $region15: #{_lambda_.8} parent=0 // pred_check_branch
    %202 = sbr.rel (0) target = $region17
  $region16: #{_lambda_.8} parent=0 // pred_region
    _
  $region17: #{_lambda_.8} parent=0 // pred_fallthru
    _
  // Predicated region
  $region18: #{_lambda_.8} parent=0 // pred_check
    _
  $region19: #{_lambda_.8} parent=0 // pred_check_branch
    %204 = sbr.rel (0) target = $region21
  $region20: #{_lambda_.8} parent=0 // pred_region
    _
  $region21: #{_lambda_.8} parent=0 // pred_fallthru
    _

// kernel: _lambda_.9
$region0: #{_lambda_.9}
  #allocation0 [shape = 'u32[]', space=smem, size = 0x4, offset = 0x4, fixed_abs, tag = 'smem constant byte address 0x4 - core index']
  #allocation1 [shape = 'u32[144,128]{1,0:T(1,128)}', space=vmem, size = 0x12000, scoped, tag = 'internal scratch']
  #allocation2 [shape = 'f32[1,1]{1,0:T(1,128)S(1)}', space=vmem, size = 0x200, scoped, tag = 'scoped memory for _lambda_.9']
  %s0 = inlined_call_operand.vmem [shape: bf16[8,288], index: 0, kind: input, shape index: {}]
  %s1 = inlined_call_operand.vmem [shape: bf16[288,32], index: 1, kind: input, shape index: {}]
  %s2 = inlined_call_operand.vmem [shape: f32[1,32], index: 2, kind: input, shape index: {}]
  %s3 = inlined_call_operand.vmem [shape: f32[1,32], index: 3, kind: input, shape index: {}]
  %s4 = inlined_call_operand.<no memory space> [shape: f32[1,1], index: 4, kind: input, shape index: {}]
  %s5 = inlined_call_operand.hbm [shape: bf16[8,32], index: 5, kind: output, shape index: {0}]
  %s6 = inlined_call_operand.vmem [shape: f32[8,1], index: 6, kind: output, shape index: {1}]
  %7 = xla_tuple %s5, %s6
  %s8 = sld [smem:[#allocation0]]
  $region38: #{_lambda_.9} parent=0
    _
  %s10 = ssub.s32 1, %s8
  %s11 = scalar_select 0, %s10, %s8
  %v12 = vstv %s4
  %13 = vst [vmem:[#allocation2] sm:$0x1] %v12
  $region1: #{_lambda_.9} parent=0
    #allocation3 [shape = 'u8[2048]{0}', space=vmem, size = 0x800, scoped, tag = 'output window, operand 0, single buffered']
    #allocation4 [shape = 's32[1]{0}', space=sflag, size = 0x4, scoped, tag = 'scoped memory for _lambda_.9']
    %14 = vsyncpa [#allocation4], 0
    // Predicated region
    $region2: #{_lambda_.9} parent=1 // pred_check
      _
    $region3: #{_lambda_.9} parent=1 // pred_check_branch
      %16 = sbr.rel (0) target = $region5
    $region4: #{_lambda_.9} parent=1 // pred_region
      _
    $region5: #{_lambda_.9} parent=1 // pred_fallthru
      _
    // Predicated region
    $region6: #{_lambda_.9} parent=1 // pred_check
      _
    $region7: #{_lambda_.9} parent=1 // pred_check_branch
      %18 = sbr.rel (0) target = $region9
    $region8: #{_lambda_.9} parent=1 // pred_region
      _
    $region9: #{_lambda_.9} parent=1 // pred_fallthru
      _
    // Predicated region
    $region10: #{_lambda_.9} parent=1 // pred_check
      _
    $region11: #{_lambda_.9} parent=1 // pred_check_branch
      %20 = sbr.rel (0) target = $region13
    $region12: #{_lambda_.9} parent=1 // pred_region
      _
    $region13: #{_lambda_.9} parent=1 // pred_fallthru
      _
    // Predicated region
    $region14: #{_lambda_.9} parent=1 // pred_check
      _
    $region15: #{_lambda_.9} parent=1 // pred_check_branch
      %22 = sbr.rel (0) target = $region17
    $region16: #{_lambda_.9} parent=1 // pred_region
      _
    $region17: #{_lambda_.9} parent=1 // pred_fallthru
      _
    // Predicated region
    $region18: #{_lambda_.9} parent=1 // pred_check
      _
    $region19: #{_lambda_.9} parent=1 // pred_check_branch
      %24 = sbr.rel (0) target = $region21
    $region20: #{_lambda_.9} parent=1 // pred_region
      _
    $region21: #{_lambda_.9} parent=1 // pred_fallthru
      _
    %v26 = vld [vmem:[%s0] sm:$0xff]
    %v27 = vld [vmem:[%s0 + $0x8] sm:$0xf]
    %v28 = vld [vmem:[%s1] sm:$0xf]
    %v29 = vld [vmem:[%s1 + $0x4] sm:$0xf]
    %v30 = vld [vmem:[%s1 + $0x8] sm:$0xf]
    %v31 = vld [vmem:[%s1 + $0xc] sm:$0xf]
    %v32 = vld [vmem:[%s1 + $0x10] sm:$0xf]
    %v33 = vld [vmem:[%s1 + $0x14] sm:$0xf]
    %v34 = vld [vmem:[%s1 + $0x18] sm:$0xf]
    %v35 = vld [vmem:[%s1 + $0x1c] sm:$0xf]
    %v36 = vld [vmem:[%s1 + $0x20] sm:$0xf]
    %v37 = vld [vmem:[%s1 + $0x24] sm:$0xf]
    %v38 = vld [vmem:[%s1 + $0x28] sm:$0xf]
    %v39 = vld [vmem:[%s1 + $0x2c] sm:$0xf]
    %v40 = vld [vmem:[%s1 + $0x30] sm:$0xf]
    %v41 = vld [vmem:[%s1 + $0x34] sm:$0xf]
    %v42 = vld [vmem:[%s1 + $0x38] sm:$0xf]
    %v43 = vld [vmem:[%s1 + $0x3c] sm:$0xf]
    %v44 = vld [vmem:[%s1 + $0x40] sm:$0xf]
    %v45 = vld [vmem:[%s1 + $0x44] sm:$0xf]
    %v46 = vld [vmem:[%s1 + $0x48] sm:$0xf]
    %v47 = vld [vmem:[%s1 + $0x4c] sm:$0xf]
    %v48 = vld [vmem:[%s1 + $0x50] sm:$0xf]
    %v49 = vld [vmem:[%s1 + $0x54] sm:$0xf]
    %v50 = vld [vmem:[%s1 + $0x58] sm:$0xf]
    %v51 = vld [vmem:[%s1 + $0x5c] sm:$0xf]
    %v52 = vld [vmem:[%s1 + $0x60] sm:$0xf]
    %v53 = vld [vmem:[%s1 + $0x64] sm:$0xf]
    %v54 = vld [vmem:[%s1 + $0x68] sm:$0xf]
    %v55 = vld [vmem:[%s1 + $0x6c] sm:$0xf]
    %v56 = vld [vmem:[%s1 + $0x70] sm:$0xf]
    %v57 = vld [vmem:[%s1 + $0x74] sm:$0xf]
    %v58 = vld [vmem:[%s1 + $0x78] sm:$0xf]
    %v59 = vld [vmem:[%s1 + $0x7c] sm:$0xf]
    %v60 = vld [vmem:[%s1 + $0x80] sm:$0xf]
    %v61 = vld [vmem:[%s1 + $0x84] sm:$0xf]
    %v62 = vld [vmem:[%s1 + $0x88] sm:$0xf]
    %v63 = vld [vmem:[%s1 + $0x8c] sm:$0xf]
    %v64 = vld [vmem:[%s2] sm:$0x1]
    %v66 = vlaneseq
    %v67 = vshrl.u32 %v66, 7
    %v68 = vsub.s32 0, %v67
    %v69 = vrot.slane %v64, %v68
    %v73 = vunpack.c.l.b16 %v26
    %v74 = vunpack.c.h.b16 %v26
    %v75 = vunpack.c.l.b16 %v27
    %v76 = vpack.c.b16 %v73, %v73
    %v77 = vpack.c.b16 %v74, %v74
    %v78 = vpack.c.b16 %v75, %v75
    %v117 = vunpack.c.l.b16 %v28
    %v118 = vunpack.c.l.b16 %v29
    %v119 = vunpack.c.l.b16 %v30
    %v120 = vunpack.c.l.b16 %v31
    %v121 = vunpack.c.l.b16 %v32
    %v122 = vunpack.c.l.b16 %v33
    %v123 = vunpack.c.l.b16 %v34
    %v124 = vunpack.c.l.b16 %v35
    %v125 = vunpack.c.l.b16 %v36
    %v126 = vunpack.c.l.b16 %v37
    %v127 = vunpack.c.l.b16 %v38
    %v128 = vunpack.c.l.b16 %v39
    %v129 = vunpack.c.l.b16 %v40
    %v130 = vunpack.c.l.b16 %v41
    %v131 = vunpack.c.l.b16 %v42
    %v132 = vunpack.c.l.b16 %v43
    %v133 = vunpack.c.l.b16 %v44
    %v134 = vunpack.c.l.b16 %v45
    %v135 = vunpack.c.l.b16 %v46
    %v136 = vunpack.c.l.b16 %v47
    %v137 = vunpack.c.l.b16 %v48
    %v138 = vunpack.c.l.b16 %v49
    %v139 = vunpack.c.l.b16 %v50
    %v140 = vunpack.c.l.b16 %v51
    %v141 = vunpack.c.l.b16 %v52
    %v142 = vunpack.c.l.b16 %v53
    %v143 = vunpack.c.l.b16 %v54
    %v144 = vunpack.c.l.b16 %v55
    %v145 = vunpack.c.l.b16 %v56
    %v146 = vunpack.c.l.b16 %v57
    %v147 = vunpack.c.l.b16 %v58
    %v148 = vunpack.c.l.b16 %v59
    %v149 = vunpack.c.l.b16 %v60
    %v150 = vunpack.c.l.b16 %v61
    %v151 = vunpack.c.l.b16 %v62
    %v152 = vunpack.c.l.b16 %v63
    %v153 = vpack.c.b16 %v118, %v117
    %v154 = vpack.c.b16 %v120, %v119
    %v155 = vpack.c.b16 %v122, %v121
    %v156 = vpack.c.b16 %v124, %v123
    %v157 = vpack.c.b16 %v126, %v125
    %v158 = vpack.c.b16 %v128, %v127
    %v159 = vpack.c.b16 %v130, %v129
    %v160 = vpack.c.b16 %v132, %v131
    %v161 = vpack.c.b16 %v134, %v133
    %v162 = vpack.c.b16 %v136, %v135
    %v163 = vpack.c.b16 %v138, %v137
    %v164 = vpack.c.b16 %v140, %v139
    %v165 = vpack.c.b16 %v142, %v141
    %v166 = vpack.c.b16 %v144, %v143
    %v167 = vpack.c.b16 %v146, %v145
    %v168 = vpack.c.b16 %v148, %v147
    %v169 = vpack.c.b16 %v150, %v149
    %v170 = vpack.c.b16 %v152, %v151
    %vm189 = vcmask 261120
    %v191 = vsel %vm189, %v78, 0
    %193 = vmatprep.subr.bf16.mxu0 0
    %194 = vmatpush1.bf16.msra.mxu0 %v153
    %195 = vmatprep.subr.bf16.mxu0 0
    %196 = vmatpush1.bf16.msra.mxu0 %v154
    %197 = vmatprep.subr.bf16.mxu0 0
    %198 = vmatpush1.bf16.msra.mxu0 %v155
    %199 = vmatprep.subr.bf16.mxu0 0
    %200 = vmatpush1.bf16.msra.mxu0 %v156
    %201 = vmatprep.subr.bf16.mxu0 0
    %202 = vmatpush1.bf16.msra.mxu0 %v157
    %203 = vmatprep.subr.bf16.mxu0 0
    %204 = vmatpush1.bf16.msra.mxu0 %v158
    %205 = vmatprep.subr.bf16.mxu0 0
    %206 = vmatpush1.bf16.msra.mxu0 %v159
    %207 = vmatprep.subr.bf16.mxu0 0
    %208 = vmatpush1.bf16.msra.mxu0 %v160
    %209 = vmatprep.subr.bf16.mxu0 0
    %210 = vmatpush1.bf16.msra.mxu0 %v161
    %211 = vmatprep.subr.bf16.mxu0 0
    %212 = vmatpush1.bf16.msra.mxu0 %v162
    %213 = vmatprep.subr.bf16.mxu0 0
    %214 = vmatpush1.bf16.msra.mxu0 %v163
    %215 = vmatprep.subr.bf16.mxu0 0
    %216 = vmatpush1.bf16.msra.mxu0 %v164
    %217 = vmatprep.subr.bf16.mxu0 0
    %218 = vmatpush1.bf16.msra.mxu0 %v165
    %219 = vmatprep.subr.bf16.mxu0 0
    %220 = vmatpush1.bf16.msra.mxu0 %v166
    %221 = vmatprep.subr.bf16.mxu0 0
    %222 = vmatpush1.bf16.msra.mxu0 %v167
    %223 = vmatprep.subr.bf16.mxu0 0
    %224 = vmatpush1.bf16.msra.mxu0 %v168
    %225 = vmatprep.mubr.bf16.mxu0 %v77
    %226 = vmatmul.mubr.bf16.gmra.mrb[0].mxu0 %v76
    %v227 = vpop.f32.mrb[0].mxu0
    %v228 = vadd.f32 %v69, %v227
    %v229 = vpop.f32.mrb[0].mxu0
    %v230 = vpop.f32.mrb[0].mxu0
    %v231 = vpop.f32.mrb[0].mxu0
    %232 = vdwg.mxu0
    %233 = vmatprep.subr.bf16.mxu0 0
    %234 = vmatpush1.bf16.msra.mxu0 %v169
    %235 = vmatprep.subr.bf16.mxu0 0
    %236 = vmatpush1.bf16.msra.mxu0 %v170
    %237 = vmatprep.subr.bf16.mxu0 0
    %238 = vmatpush1.bf16.msra.mxu0 0
    %239 = vmatprep.subr.bf16.mxu0 0
    %240 = vmatpush1.bf16.msra.mxu0 0
    %241 = vmatprep.subr.bf16.mxu0 0
    %242 = vmatpush1.bf16.msra.mxu0 0
    %243 = vmatprep.subr.bf16.mxu0 0
    %244 = vmatpush1.bf16.msra.mxu0 0
    %245 = vmatprep.subr.bf16.mxu0 0
    %246 = vmatpush1.bf16.msra.mxu0 0
    %247 = vmatprep.subr.bf16.mxu0 0
    %248 = vmatpush1.bf16.msra.mxu0 0
    %249 = vmatprep.subr.bf16.mxu0 0
    %250 = vmatpush1.bf16.msra.mxu0 0
    %251 = vmatprep.subr.bf16.mxu0 0
    %252 = vmatpush1.bf16.msra.mxu0 0
    %253 = vmatprep.subr.bf16.mxu0 0
    %254 = vmatpush1.bf16.msra.mxu0 0
    %255 = vmatprep.subr.bf16.mxu0 0
    %256 = vmatpush1.bf16.msra.mxu0 0
    %257 = vmatprep.subr.bf16.mxu0 0
    %258 = vmatpush1.bf16.msra.mxu0 0
    %259 = vmatprep.subr.bf16.mxu0 0
    %260 = vmatpush1.bf16.msra.mxu0 0
    %261 = vmatprep.subr.bf16.mxu0 0
    %262 = vmatpush1.bf16.msra.mxu0 0
    %263 = vmatprep.subr.bf16.mxu0 0
    %264 = vmatpush1.bf16.msra.mxu0 0
    %265 = vmatprep.mubr.bf16.mxu0 0
    %266 = vmatmul.mubr.bf16.gmra.mrb[0].mxu0 %v191
    %v267 = vpop.f32.mrb[0].mxu0
    %v268 = vadd.f32 %v228, %v267
    %v269 = vpop.f32.mrb[0].mxu0
    %v270 = vpop.f32.mrb[0].mxu0
    %v271 = vpop.f32.mrb[0].mxu0
    %272 = vdwg.mxu0
    %v273 = vmul.f32 %v268, 0.2
    %v274 = vmax.f32 %v268, %v273
    %v275 = vpack.c.bf16 %v274, %v274
    %vm276 = vcmask 257024
    %277 = vst.msk [vmem:[#allocation3] sm:$0xf] %vm276, %v275
    %v278 = vld [vmem:[%s3] sm:$0x1]
    %v280 = vlaneseq
    %v281 = vshrl.u32 %v280, 7
    %v282 = vsub.s32 0, %v281
    %v283 = vrot.slane %v278, %v282
    %v285 = vmul.f32 %v274, %v283
    %v286 = vsel %vm189, %v285, 0.0
    %287 = vadd.xlane.f32.xlu0 %v286
    %v288 = vpop.xlane.xlu0 %287
    %v289 = vld [vmem:[#allocation2] sm:$0x1]
    %v291 = vlaneseq
    %v292 = vshrl.u32 %v291, 7
    %v293 = vsub.s32 0, %v292
    %v294 = vrot.slane %v289, %v293
    %v296 = vadd.f32 %v288, %v294
    %vm297 = vcmask 7168
    %298 = vst.msk [vmem:[%s6] sm:$0xff] %vm297, %v296
    // Predicated region
    $region22: #{_lambda_.9} parent=1 // pred_check
      _
    $region23: #{_lambda_.9} parent=1 // pred_check_branch
      %300 = sbr.rel (0) target = $region25
    $region24: #{_lambda_.9} parent=1 // pred_region
      %s302 = ssub.s32 64, 64
      %303 = vsyncadd [#allocation4], %s302
      %s305 = sshll.u32 [#allocation3], 4
      %s306 = int_to_ptr.vmem [resolvable:$true] %s305
      %308 = dma.vmem_to_hbm [thread:$0]  %s306, 64, %s5, [#allocation4]
    $region25: #{_lambda_.9} parent=1 // pred_fallthru
      _
    // Predicated region
    $region26: #{_lambda_.9} parent=1 // pred_check
      _
    $region27: #{_lambda_.9} parent=1 // pred_check_branch
      %310 = sbr.rel (0) target = $region29
    $region28: #{_lambda_.9} parent=1 // pred_region
      _
    $region29: #{_lambda_.9} parent=1 // pred_fallthru
      _
    // Predicated region
    $region30: #{_lambda_.9} parent=1 // pred_check
      _
    $region31: #{_lambda_.9} parent=1 // pred_check_branch
      %312 = sbr.rel (0) target = $region33
    $region32: #{_lambda_.9} parent=1 // pred_region
      %313 = dma.done [#allocation4], 64
    $region33: #{_lambda_.9} parent=1 // pred_fallthru
      _
    // Predicated region
    $region34: #{_lambda_.9} parent=1 // pred_check
      _
    $region35: #{_lambda_.9} parent=1 // pred_check_branch
      %315 = sbr.rel (0) target = $region37
    $region36: #{_lambda_.9} parent=1 // pred_region
      _
    $region37: #{_lambda_.9} parent=1 // pred_fallthru
      _
    %316 = vsyncpa [#allocation4], 1

</llo_original>
